<compile_context>
chip_gen: v7x
topology: tpu7x:2x2x1
jax: 0.10.0
libtpu: 0.0.40
codegen_flags: <defaults>
</compile_context>

<pallas_src>
import functools

import jax
import jax.numpy as jnp
from jax.experimental import pallas as pl
from jax.experimental.pallas import tpu as pltpu

EPS = 1e-5          # nn.BatchNorm2d default
NEG_SLOPE = 0.01    # nn.LeakyReLU default


# ---------------------------------------------------------------------------
# Pass 1: conv3x3 (9 shift-and-accumulate MXU matmuls) + per-image BN partials
# ---------------------------------------------------------------------------
def _conv_stats_kernel(x_ref, w_ref, cm_ref, y_ref, s_ref, xpad_ref, *, C, H, W):
    """x_ref   : (1, C, H*W)        f32   one image, flat row-major spatial
       w_ref   : (9, C, C)          bf16  conv weight, tap-major (dy*3+dx)
       cm_ref  : (2, 1, H*W)        bf16  column masks for dx=0 / dx=2 taps
       y_ref   : (1, C, H*W)        bf16  conv output (lane-dense), read by pass 2
       s_ref   : (1, C, 2)          f32   [:,0]=sum, [:,1]=centered M2 (per image)
       xpad_ref: (C, H*W + 2W + 2)  bf16  flat zero-padded image scratch
    """
    HW = H * W
    PAD = W + 1

    # Flat zero pads + image copy (bf16 for the MXU). 3 stores per grid step;
    # pads are rewritten each step so the kernel stays correct when the
    # "parallel" grid axis is split across TensorCores (v7x).
    xpad_ref[:, 0:PAD] = jnp.zeros((C, PAD), jnp.bfloat16)
    xpad_ref[:, PAD + HW:HW + 2 * W + 2] = jnp.zeros((C, PAD), jnp.bfloat16)
    xpad_ref[:, PAD:PAD + HW] = x_ref[0].astype(jnp.bfloat16)

    # out[r, c] = sum_{dy,dx} W[:, :, dy, dx] @ x[:, r+dy-1, c+dx-1]
    # Flat source offset for tap (dy, dx) is (dy-1)*W + (dx-1); reading the
    # padded scratch at  dy*W + dx  realizes it with zero fill at the top /
    # bottom image borders.  Left/right borders are masked per column.
    acc = jnp.zeros((C, HW), jnp.float32)
    for dy in range(3):
        for dx in range(3):
            off = dy * W + dx
            xs = xpad_ref[:, off:off + HW]              # (C, HW) bf16
            if dx == 0:
                xs = xs * cm_ref[0]                     # needs a left neighbor
            elif dx == 2:
                xs = xs * cm_ref[1]                     # needs a right neighbor
            acc = acc + jnp.dot(w_ref[dy * 3 + dx], xs,
                                preferred_element_type=jnp.float32)

    y_ref[0] = acc.astype(jnp.bfloat16)

    # Per-image BN partials from the f32 accumulator: sum + centered M2
    # (Chan-combined in the wrapper -> no E[x^2]-E[x]^2 cancellation).
    bsum = jnp.sum(acc, axis=1, keepdims=True)          # (C, 1)
    bmean = bsum * (1.0 / HW)
    diff = acc - bmean
    s_ref[0, :, 0:1] = bsum
    s_ref[0, :, 1:2] = jnp.sum(diff * diff, axis=1, keepdims=True)


def _conv_stats_call(x_flat, w9, col_masks, *, C, H, W):
    n = x_flat.shape[0]
    hw = H * W
    return pl.pallas_call(
        functools.partial(_conv_stats_kernel, C=C, H=H, W=W),
        out_shape=(jax.ShapeDtypeStruct((n, C, hw), jnp.bfloat16),
                   jax.ShapeDtypeStruct((n, C, 2), jnp.float32)),
        grid=(n,),
        in_specs=[
            pl.BlockSpec((1, C, hw), lambda i: (i, 0, 0)),
            pl.BlockSpec((9, C, C), lambda i: (0, 0, 0)),
            pl.BlockSpec((2, 1, hw), lambda i: (0, 0, 0)),
        ],
        out_specs=(
            pl.BlockSpec((1, C, hw), lambda i: (i, 0, 0)),
            pl.BlockSpec((1, C, 2), lambda i: (i, 0, 0)),
        ),
        scratch_shapes=[pltpu.VMEM((C, hw + 2 * W + 2), jnp.bfloat16)],
        compiler_params=pltpu.CompilerParams(
            dimension_semantics=("parallel",)),
    )(x_flat, w9, col_masks)


# ---------------------------------------------------------------------------
# Pass 2: folded-BN scale/shift + (residual) + LeakyReLU, lane-dense I/O
# ---------------------------------------------------------------------------
def _norm_act_kernel(y_ref, sc_ref, sh_ref, o_ref):
    z = y_ref[0].astype(jnp.float32) * sc_ref[...] + sh_ref[...]
    o_ref[0] = jnp.where(z >= 0.0, z, NEG_SLOPE * z).astype(o_ref.dtype)


def _norm_res_act_kernel(y_ref, sc_ref, sh_ref, x_ref, o_ref):
    z = y_ref[0].astype(jnp.float32) * sc_ref[...] + sh_ref[...] + x_ref[0]
    o_ref[0] = jnp.where(z >= 0.0, z, NEG_SLOPE * z).astype(o_ref.dtype)


def _norm_call(y, scale, shift, resid, *, C, HW):
    n = y.shape[0]
    in_specs = [
        pl.BlockSpec((1, C, HW), lambda i: (i, 0, 0)),
        pl.BlockSpec((C, 1), lambda i: (0, 0)),
        pl.BlockSpec((C, 1), lambda i: (0, 0)),
    ]
    if resid is None:
        kernel = _norm_act_kernel
        args = (y, scale, shift)
    else:
        kernel = _norm_res_act_kernel
        in_specs.append(pl.BlockSpec((1, C, HW), lambda i: (i, 0, 0)))
        args = (y, scale, shift, resid)
    return pl.pallas_call(
        kernel,
        out_shape=jax.ShapeDtypeStruct((n, C, HW), jnp.float32),
        grid=(n,),
        in_specs=in_specs,
        out_specs=pl.BlockSpec((1, C, HW), lambda i: (i, 0, 0)),
        compiler_params=pltpu.CompilerParams(
            dimension_semantics=("parallel",)),
    )(*args)


# ---------------------------------------------------------------------------
# Wrapper glue
# ---------------------------------------------------------------------------
def init_params(key, c):
    """Deterministic synthetic parameters matching the module's shapes."""
    k1, k2 = jax.random.split(key, 2)
    w_conv1 = jax.random.normal(k1, (c, c, 3, 3), jnp.float32) * 0.1
    b_conv1 = jax.random.normal(k2, (c,), jnp.float32) * 0.1
    gamma = jnp.ones((c,), jnp.float32)   # nn.BatchNorm2d default affine init
    beta = jnp.zeros((c,), jnp.float32)
    return dict(w_conv1=w_conv1, b_conv1=b_conv1, gamma=gamma, beta=beta)


@jax.jit
def resnet_forward(x_nchw, params):
    """conv1 -> bn1 -> LeakyReLU -> conv1 -> bn1 -> (+x) -> LeakyReLU (NCHW)."""
    n, c, h, w = x_nchw.shape
    hw = h * w
    gamma, beta = params["gamma"], params["beta"]

    # Weight in tap-major (9, Cout, Cin) bf16; conv bias dropped on purpose
    # (training-mode BN mean subtraction cancels a per-channel bias exactly).
    w9 = jnp.transpose(params["w_conv1"], (2, 3, 0, 1)).reshape(9, c, c)
    w9 = w9.astype(jnp.bfloat16)

    # Column masks for the dx=0 / dx=2 taps (image left/right borders).
    col = jnp.arange(hw, dtype=jnp.int32) % w
    col_masks = jnp.stack([(col >= 1), (col <= w - 2)]
                          ).astype(jnp.bfloat16).reshape(2, 1, hw)

    xf = x_nchw.astype(jnp.float32).reshape(n, c, hw)   # free view of NCHW

    def stage(inp, resid):
        y, part = _conv_stats_call(inp, w9, col_masks, C=c, H=h, W=w)
        # Exact batch stats via Chan combine of per-image (sum, centered M2).
        cnt = hw
        tot = n * hw
        sums = part[:, :, 0]                              # (n, c)
        m2s = part[:, :, 1]                               # (n, c)
        mean = jnp.sum(sums, axis=0) / tot
        bmean = sums / cnt
        m2 = jnp.sum(m2s, axis=0) + cnt * jnp.sum((bmean - mean[None, :]) ** 2,
                                                  axis=0)
        var = m2 / tot                                    # biased, as torch BN
        inv = jax.lax.rsqrt(var + EPS)
        scale = (gamma * inv).reshape(c, 1)
        shift = (beta - mean * gamma * inv).reshape(c, 1)
        return _norm_call(y, scale, shift, resid, C=c, HW=hw)

    a1 = stage(xf, None)       # conv1 -> bn1 -> LeakyReLU
    out = stage(a1, xf)        # conv1 -> bn1 -> (+ init_x) -> LeakyReLU
    return out.reshape(n, c, h, w)


# ---------------------------------------------------------------------------
# Pure-JAX reference (lax.conv). Conv inputs are cast to bf16 to mirror the
# kernel's bf16 MXU inputs (accumulation stays f32).
# ---------------------------------------------------------------------------
def _reference_forward(x, params):
    w = params["w_conv1"].astype(jnp.bfloat16)
    b = params["b_conv1"]
    gamma, beta = params["gamma"], params["beta"]

    def conv(t):
        y = jax.lax.conv_general_dilated(
            t.astype(jnp.bfloat16), w, window_strides=(1, 1), padding="SAME",
            dimension_numbers=("NCHW", "OIHW", "NCHW"),
            preferred_element_type=jnp.float32)
        return y + b[None, :, None, None]

    def bn(t):
        mu = jnp.mean(t, axis=(0, 2, 3), keepdims=True)
        var = jnp.mean((t - mu) ** 2, axis=(0, 2, 3), keepdims=True)
        return ((t - mu) * jax.lax.rsqrt(var + EPS) * gamma[None, :, None, None]
                + beta[None, :, None, None])

    def lrelu(t):
        return jnp.where(t >= 0.0, t, NEG_SLOPE * t)

    a1 = lrelu(bn(conv(x)))
    out = bn(conv(a1)) + x
    return lrelu(out)


if __name__ == "__main__":
    key = jax.random.PRNGKey(0)
    k_param, k_x = jax.random.split(key)

    N, C, H, W = 2, 4, 16, 16   # input_cha = 4
    params = init_params(k_param, C)
    x = jax.random.normal(k_x, (N, C, H, W), jnp.float32)

    out = jax.block_until_ready(resnet_forward(x, params))
    ref = _reference_forward(x, params)

    assert out.shape == (N, C, H, W)
    assert out.dtype == jnp.float32
    # Tolerance covers bf16 MXU inputs (both paths) plus the kernel's bf16
    # conv-output intermediate between pass 1 and pass 2 (BN stats stay f32).
    assert jnp.allclose(out, ref, rtol=2e-2, atol=2e-2), "mismatch vs reference"

    print("KERNEL_OK")
</pallas_src>

<mosaic_0001>
module attributes {stable_mosaic.version = 11 : i64} {
  func.func @_conv_stats_kernel(%arg0: i32, %arg1: memref<1x4x256xf32, #tpu.memory_space<vmem>>, %arg2: memref<9x4x4xbf16, #tpu.memory_space<vmem>>, %arg3: memref<2x1x256xbf16, #tpu.memory_space<vmem>>, %arg4: memref<1x4x256xbf16, #tpu.memory_space<vmem>>, %arg5: memref<1x4x2xf32, #tpu.memory_space<vmem>>, %arg6: memref<4x290xbf16, #tpu.memory_space<vmem>>) attributes {dimension_semantics = [#tpu.dimension_semantics<parallel>], iteration_bounds = array<i64: 2>, scalar_prefetch = 0 : i64, scratch_operands = 1 : i64, tpu.core_type = #tpu.core_type<tc>, window_params = [{transform_indices = @transform_0, window_bounds = array<i64: 1, 4, 256>}, {pipeline_mode = #tpu.pipeline_mode<synchronous>, transform_indices = @transform_1, window_bounds = array<i64: 9, 4, 4>}, {pipeline_mode = #tpu.pipeline_mode<synchronous>, transform_indices = @transform_2, window_bounds = array<i64: 2, 1, 256>}, {transform_indices = @transform_3, window_bounds = array<i64: 1, 4, 256>}, {transform_indices = @transform_4, window_bounds = array<i64: 1, 4, 2>}]} {
    %cst = arith.constant 0.000000e+00 : bf16
    %0 = vector.broadcast %cst : bf16 to vector<4x17xbf16>
    %c0 = arith.constant 0 : index
    %c0_0 = arith.constant 0 : index
    %1 = vector.load %arg6[%c0, %c0_0] : memref<4x290xbf16, #tpu.memory_space<vmem>>, vector<4x17xbf16>
    tpu.vector_store %arg6[%c0, %c0_0], %0 {strides = array<i32>} : memref<4x290xbf16, #tpu.memory_space<vmem>>, vector<4x17xbf16>,
    %cst_1 = arith.constant 0.000000e+00 : bf16
    %2 = vector.broadcast %cst_1 : bf16 to vector<4x17xbf16>
    %c0_2 = arith.constant 0 : index
    %c273 = arith.constant 273 : index
    %3 = vector.load %arg6[%c0_2, %c273] : memref<4x290xbf16, #tpu.memory_space<vmem>>, vector<4x17xbf16>
    tpu.vector_store %arg6[%c0_2, %c273], %2 {strides = array<i32>} : memref<4x290xbf16, #tpu.memory_space<vmem>>, vector<4x17xbf16>,
    %c0_3 = arith.constant 0 : index
    %c0_4 = arith.constant 0 : index
    %c0_5 = arith.constant 0 : index
    %4 = vector.load %arg1[%c0_3, %c0_4, %c0_5] : memref<1x4x256xf32, #tpu.memory_space<vmem>>, vector<1x4x256xf32>
    %5 = vector.shape_cast %4 : vector<1x4x256xf32> to vector<4x256xf32>
    %6 = arith.truncf %5 : vector<4x256xf32> to vector<4x256xbf16>
    %c0_6 = arith.constant 0 : index
    %c17 = arith.constant 17 : index
    %7 = vector.load %arg6[%c0_6, %c17] : memref<4x290xbf16, #tpu.memory_space<vmem>>, vector<4x256xbf16>
    tpu.vector_store %arg6[%c0_6, %c17], %6 {strides = array<i32>} : memref<4x290xbf16, #tpu.memory_space<vmem>>, vector<4x256xbf16>,
    %cst_7 = arith.constant 0.000000e+00 : f32
    %8 = vector.broadcast %cst_7 : f32 to vector<4x256xf32>
    %c0_8 = arith.constant 0 : index
    %c0_9 = arith.constant 0 : index
    %9 = vector.load %arg6[%c0_8, %c0_9] : memref<4x290xbf16, #tpu.memory_space<vmem>>, vector<4x256xbf16>
    %c0_10 = arith.constant 0 : index
    %c0_11 = arith.constant 0 : index
    %c0_12 = arith.constant 0 : index
    %10 = vector.load %arg3[%c0_10, %c0_11, %c0_12] : memref<2x1x256xbf16, #tpu.memory_space<vmem>>, vector<1x1x256xbf16>
    %11 = vector.shape_cast %10 : vector<1x1x256xbf16> to vector<1x256xbf16>
    %12 = vector.broadcast %11 : vector<1x256xbf16> to vector<4x256xbf16>
    %13 = arith.mulf %9, %12 : vector<4x256xbf16>
    %c0_13 = arith.constant 0 : index
    %c0_14 = arith.constant 0 : index
    %c0_15 = arith.constant 0 : index
    %14 = vector.load %arg2[%c0_13, %c0_14, %c0_15] : memref<9x4x4xbf16, #tpu.memory_space<vmem>>, vector<1x4x4xbf16>
    %15 = vector.shape_cast %14 : vector<1x4x4xbf16> to vector<4x4xbf16>
    %cst_16 = arith.constant dense<0.000000e+00> : vector<4x256xf32>
    %16 = tpu.matmul %15, %13, %cst_16 {dimension_numbers = #tpu.dot_dimension_numbers<[1], [0], [0], [1], [0, 0, 1, 1], [], []>} : vector<4x4xbf16>, vector<4x256xbf16>, vector<4x256xf32> -> vector<4x256xf32>
    %17 = arith.addf %8, %16 : vector<4x256xf32>
    %c0_17 = arith.constant 0 : index
    %c1 = arith.constant 1 : index
    %18 = vector.load %arg6[%c0_17, %c1] : memref<4x290xbf16, #tpu.memory_space<vmem>>, vector<4x256xbf16>
    %c1_18 = arith.constant 1 : index
    %c0_19 = arith.constant 0 : index
    %c0_20 = arith.constant 0 : index
    %19 = vector.load %arg2[%c1_18, %c0_19, %c0_20] : memref<9x4x4xbf16, #tpu.memory_space<vmem>>, vector<1x4x4xbf16>
    %20 = vector.shape_cast %19 : vector<1x4x4xbf16> to vector<4x4xbf16>
    %cst_21 = arith.constant dense<0.000000e+00> : vector<4x256xf32>
    %21 = tpu.matmul %20, %18, %cst_21 {dimension_numbers = #tpu.dot_dimension_numbers<[1], [0], [0], [1], [0, 0, 1, 1], [], []>} : vector<4x4xbf16>, vector<4x256xbf16>, vector<4x256xf32> -> vector<4x256xf32>
    %22 = arith.addf %17, %21 : vector<4x256xf32>
    %c0_22 = arith.constant 0 : index
    %c2 = arith.constant 2 : index
    %23 = vector.load %arg6[%c0_22, %c2] : memref<4x290xbf16, #tpu.memory_space<vmem>>, vector<4x256xbf16>
    %c1_23 = arith.constant 1 : index
    %c0_24 = arith.constant 0 : index
    %c0_25 = arith.constant 0 : index
    %24 = vector.load %arg3[%c1_23, %c0_24, %c0_25] : memref<2x1x256xbf16, #tpu.memory_space<vmem>>, vector<1x1x256xbf16>
    %25 = vector.shape_cast %24 : vector<1x1x256xbf16> to vector<1x256xbf16>
    %26 = vector.broadcast %25 : vector<1x256xbf16> to vector<4x256xbf16>
    %27 = arith.mulf %23, %26 : vector<4x256xbf16>
    %c2_26 = arith.constant 2 : index
    %c0_27 = arith.constant 0 : index
    %c0_28 = arith.constant 0 : index
    %28 = vector.load %arg2[%c2_26, %c0_27, %c0_28] : memref<9x4x4xbf16, #tpu.memory_space<vmem>>, vector<1x4x4xbf16>
    %29 = vector.shape_cast %28 : vector<1x4x4xbf16> to vector<4x4xbf16>
    %cst_29 = arith.constant dense<0.000000e+00> : vector<4x256xf32>
    %30 = tpu.matmul %29, %27, %cst_29 {dimension_numbers = #tpu.dot_dimension_numbers<[1], [0], [0], [1], [0, 0, 1, 1], [], []>} : vector<4x4xbf16>, vector<4x256xbf16>, vector<4x256xf32> -> vector<4x256xf32>
    %31 = arith.addf %22, %30 : vector<4x256xf32>
    %c0_30 = arith.constant 0 : index
    %c16 = arith.constant 16 : index
    %32 = vector.load %arg6[%c0_30, %c16] : memref<4x290xbf16, #tpu.memory_space<vmem>>, vector<4x256xbf16>
    %c0_31 = arith.constant 0 : index
    %c0_32 = arith.constant 0 : index
    %c0_33 = arith.constant 0 : index
    %33 = vector.load %arg3[%c0_31, %c0_32, %c0_33] : memref<2x1x256xbf16, #tpu.memory_space<vmem>>, vector<1x1x256xbf16>
    %34 = vector.shape_cast %33 : vector<1x1x256xbf16> to vector<1x256xbf16>
    %35 = vector.broadcast %34 : vector<1x256xbf16> to vector<4x256xbf16>
    %36 = arith.mulf %32, %35 : vector<4x256xbf16>
    %c3 = arith.constant 3 : index
    %c0_34 = arith.constant 0 : index
    %c0_35 = arith.constant 0 : index
    %37 = vector.load %arg2[%c3, %c0_34, %c0_35] : memref<9x4x4xbf16, #tpu.memory_space<vmem>>, vector<1x4x4xbf16>
    %38 = vector.shape_cast %37 : vector<1x4x4xbf16> to vector<4x4xbf16>
    %cst_36 = arith.constant dense<0.000000e+00> : vector<4x256xf32>
    %39 = tpu.matmul %38, %36, %cst_36 {dimension_numbers = #tpu.dot_dimension_numbers<[1], [0], [0], [1], [0, 0, 1, 1], [], []>} : vector<4x4xbf16>, vector<4x256xbf16>, vector<4x256xf32> -> vector<4x256xf32>
    %40 = arith.addf %31, %39 : vector<4x256xf32>
    %c0_37 = arith.constant 0 : index
    %c17_38 = arith.constant 17 : index
    %41 = vector.load %arg6[%c0_37, %c17_38] : memref<4x290xbf16, #tpu.memory_space<vmem>>, vector<4x256xbf16>
    %c4 = arith.constant 4 : index
    %c0_39 = arith.constant 0 : index
    %c0_40 = arith.constant 0 : index
    %42 = vector.load %arg2[%c4, %c0_39, %c0_40] : memref<9x4x4xbf16, #tpu.memory_space<vmem>>, vector<1x4x4xbf16>
    %43 = vector.shape_cast %42 : vector<1x4x4xbf16> to vector<4x4xbf16>
    %cst_41 = arith.constant dense<0.000000e+00> : vector<4x256xf32>
    %44 = tpu.matmul %43, %41, %cst_41 {dimension_numbers = #tpu.dot_dimension_numbers<[1], [0], [0], [1], [0, 0, 1, 1], [], []>} : vector<4x4xbf16>, vector<4x256xbf16>, vector<4x256xf32> -> vector<4x256xf32>
    %45 = arith.addf %40, %44 : vector<4x256xf32>
    %c0_42 = arith.constant 0 : index
    %c18 = arith.constant 18 : index
    %46 = vector.load %arg6[%c0_42, %c18] : memref<4x290xbf16, #tpu.memory_space<vmem>>, vector<4x256xbf16>
    %c1_43 = arith.constant 1 : index
    %c0_44 = arith.constant 0 : index
    %c0_45 = arith.constant 0 : index
    %47 = vector.load %arg3[%c1_43, %c0_44, %c0_45] : memref<2x1x256xbf16, #tpu.memory_space<vmem>>, vector<1x1x256xbf16>
    %48 = vector.shape_cast %47 : vector<1x1x256xbf16> to vector<1x256xbf16>
    %49 = vector.broadcast %48 : vector<1x256xbf16> to vector<4x256xbf16>
    %50 = arith.mulf %46, %49 : vector<4x256xbf16>
    %c5 = arith.constant 5 : index
    %c0_46 = arith.constant 0 : index
    %c0_47 = arith.constant 0 : index
    %51 = vector.load %arg2[%c5, %c0_46, %c0_47] : memref<9x4x4xbf16, #tpu.memory_space<vmem>>, vector<1x4x4xbf16>
    %52 = vector.shape_cast %51 : vector<1x4x4xbf16> to vector<4x4xbf16>
    %cst_48 = arith.constant dense<0.000000e+00> : vector<4x256xf32>
    %53 = tpu.matmul %52, %50, %cst_48 {dimension_numbers = #tpu.dot_dimension_numbers<[1], [0], [0], [1], [0, 0, 1, 1], [], []>} : vector<4x4xbf16>, vector<4x256xbf16>, vector<4x256xf32> -> vector<4x256xf32>
    %54 = arith.addf %45, %53 : vector<4x256xf32>
    %c0_49 = arith.constant 0 : index
    %c32 = arith.constant 32 : index
    %55 = vector.load %arg6[%c0_49, %c32] : memref<4x290xbf16, #tpu.memory_space<vmem>>, vector<4x256xbf16>
    %c0_50 = arith.constant 0 : index
    %c0_51 = arith.constant 0 : index
    %c0_52 = arith.constant 0 : index
    %56 = vector.load %arg3[%c0_50, %c0_51, %c0_52] : memref<2x1x256xbf16, #tpu.memory_space<vmem>>, vector<1x1x256xbf16>
    %57 = vector.shape_cast %56 : vector<1x1x256xbf16> to vector<1x256xbf16>
    %58 = vector.broadcast %57 : vector<1x256xbf16> to vector<4x256xbf16>
    %59 = arith.mulf %55, %58 : vector<4x256xbf16>
    %c6 = arith.constant 6 : index
    %c0_53 = arith.constant 0 : index
    %c0_54 = arith.constant 0 : index
    %60 = vector.load %arg2[%c6, %c0_53, %c0_54] : memref<9x4x4xbf16, #tpu.memory_space<vmem>>, vector<1x4x4xbf16>
    %61 = vector.shape_cast %60 : vector<1x4x4xbf16> to vector<4x4xbf16>
    %cst_55 = arith.constant dense<0.000000e+00> : vector<4x256xf32>
    %62 = tpu.matmul %61, %59, %cst_55 {dimension_numbers = #tpu.dot_dimension_numbers<[1], [0], [0], [1], [0, 0, 1, 1], [], []>} : vector<4x4xbf16>, vector<4x256xbf16>, vector<4x256xf32> -> vector<4x256xf32>
    %63 = arith.addf %54, %62 : vector<4x256xf32>
    %c0_56 = arith.constant 0 : index
    %c33 = arith.constant 33 : index
    %64 = vector.load %arg6[%c0_56, %c33] : memref<4x290xbf16, #tpu.memory_space<vmem>>, vector<4x256xbf16>
    %c7 = arith.constant 7 : index
    %c0_57 = arith.constant 0 : index
    %c0_58 = arith.constant 0 : index
    %65 = vector.load %arg2[%c7, %c0_57, %c0_58] : memref<9x4x4xbf16, #tpu.memory_space<vmem>>, vector<1x4x4xbf16>
    %66 = vector.shape_cast %65 : vector<1x4x4xbf16> to vector<4x4xbf16>
    %cst_59 = arith.constant dense<0.000000e+00> : vector<4x256xf32>
    %67 = tpu.matmul %66, %64, %cst_59 {dimension_numbers = #tpu.dot_dimension_numbers<[1], [0], [0], [1], [0, 0, 1, 1], [], []>} : vector<4x4xbf16>, vector<4x256xbf16>, vector<4x256xf32> -> vector<4x256xf32>
    %68 = arith.addf %63, %67 : vector<4x256xf32>
    %c0_60 = arith.constant 0 : index
    %c34 = arith.constant 34 : index
    %69 = vector.load %arg6[%c0_60, %c34] : memref<4x290xbf16, #tpu.memory_space<vmem>>, vector<4x256xbf16>
    %c1_61 = arith.constant 1 : index
    %c0_62 = arith.constant 0 : index
    %c0_63 = arith.constant 0 : index
    %70 = vector.load %arg3[%c1_61, %c0_62, %c0_63] : memref<2x1x256xbf16, #tpu.memory_space<vmem>>, vector<1x1x256xbf16>
    %71 = vector.shape_cast %70 : vector<1x1x256xbf16> to vector<1x256xbf16>
    %72 = vector.broadcast %71 : vector<1x256xbf16> to vector<4x256xbf16>
    %73 = arith.mulf %69, %72 : vector<4x256xbf16>
    %c8 = arith.constant 8 : index
    %c0_64 = arith.constant 0 : index
    %c0_65 = arith.constant 0 : index
    %74 = vector.load %arg2[%c8, %c0_64, %c0_65] : memref<9x4x4xbf16, #tpu.memory_space<vmem>>, vector<1x4x4xbf16>
    %75 = vector.shape_cast %74 : vector<1x4x4xbf16> to vector<4x4xbf16>
    %cst_66 = arith.constant dense<0.000000e+00> : vector<4x256xf32>
    %76 = tpu.matmul %75, %73, %cst_66 {dimension_numbers = #tpu.dot_dimension_numbers<[1], [0], [0], [1], [0, 0, 1, 1], [], []>} : vector<4x4xbf16>, vector<4x256xbf16>, vector<4x256xf32> -> vector<4x256xf32>
    %77 = arith.addf %68, %76 : vector<4x256xf32>
    %78 = arith.truncf %77 : vector<4x256xf32> to vector<4x256xbf16>
    %c0_67 = arith.constant 0 : index
    %c0_68 = arith.constant 0 : index
    %c0_69 = arith.constant 0 : index
    %79 = vector.load %arg4[%c0_67, %c0_68, %c0_69] : memref<1x4x256xbf16, #tpu.memory_space<vmem>>, vector<1x4x256xbf16>
    %80 = vector.shape_cast %79 : vector<1x4x256xbf16> to vector<4x256xbf16>
    %81 = vector.shape_cast %78 : vector<4x256xbf16> to vector<1x4x256xbf16>
    tpu.vector_store %arg4[%c0_67, %c0_68, %c0_69], %81 {strides = array<i32>} : memref<1x4x256xbf16, #tpu.memory_space<vmem>>, vector<1x4x256xbf16>,
    %cst_70 = arith.constant dense<0.000000e+00> : vector<4xf32>
    %82 = vector.multi_reduction <add>, %77, %cst_70 [1] : vector<4x256xf32> to vector<4xf32>
    %83 = vector.shape_cast %82 : vector<4xf32> to vector<4x1xf32>
    %cst_71 = arith.constant 3.906250e-03 : f32
    %84 = vector.broadcast %cst_71 : f32 to vector<4x1xf32>
    %85 = arith.mulf %83, %84 : vector<4x1xf32>
    %86 = vector.broadcast %85 : vector<4x1xf32> to vector<4x256xf32>
    %87 = arith.subf %77, %86 : vector<4x256xf32>
    %c0_72 = arith.constant 0 : index
    %c0_73 = arith.constant 0 : index
    %c0_74 = arith.constant 0 : index
    %88 = vector.load %arg5[%c0_72, %c0_73, %c0_74] : memref<1x4x2xf32, #tpu.memory_space<vmem>>, vector<1x4x1xf32>
    %89 = vector.shape_cast %88 : vector<1x4x1xf32> to vector<4x1xf32>
    %90 = vector.shape_cast %83 : vector<4x1xf32> to vector<1x4x1xf32>
    tpu.vector_store %arg5[%c0_72, %c0_73, %c0_74], %90 {strides = array<i32>} : memref<1x4x2xf32, #tpu.memory_space<vmem>>, vector<1x4x1xf32>,
    %91 = arith.mulf %87, %87 : vector<4x256xf32>
    %cst_75 = arith.constant dense<0.000000e+00> : vector<4xf32>
    %92 = vector.multi_reduction <add>, %91, %cst_75 [1] : vector<4x256xf32> to vector<4xf32>
    %93 = vector.shape_cast %92 : vector<4xf32> to vector<4x1xf32>
    %c0_76 = arith.constant 0 : index
    %c0_77 = arith.constant 0 : index
    %c1_78 = arith.constant 1 : index
    %94 = vector.load %arg5[%c0_76, %c0_77, %c1_78] : memref<1x4x2xf32, #tpu.memory_space<vmem>>, vector<1x4x1xf32>
    %95 = vector.shape_cast %94 : vector<1x4x1xf32> to vector<4x1xf32>
    %96 = vector.shape_cast %93 : vector<4x1xf32> to vector<1x4x1xf32>
    tpu.vector_store %arg5[%c0_76, %c0_77, %c1_78], %96 {strides = array<i32>} : memref<1x4x2xf32, #tpu.memory_space<vmem>>, vector<1x4x1xf32>,
    return
  }
  func.func @transform_0(%arg0: i32) -> (i32, i32, i32) {
    %c0_i32 = arith.constant 0 : i32
    %c0_i32_0 = arith.constant 0 : i32
    %c0_i32_1 = arith.constant 0 : i32
    return %arg0, %c0_i32, %c0_i32_0 : i32, i32, i32
  }
  func.func @transform_1(%arg0: i32) -> (i32, i32, i32) {
    %c0_i32 = arith.constant 0 : i32
    %c0_i32_0 = arith.constant 0 : i32
    %c0_i32_1 = arith.constant 0 : i32
    %c0_i32_2 = arith.constant 0 : i32
    return %c0_i32, %c0_i32_0, %c0_i32_1 : i32, i32, i32
  }
  func.func @transform_2(%arg0: i32) -> (i32, i32, i32) {
    %c0_i32 = arith.constant 0 : i32
    %c0_i32_0 = arith.constant 0 : i32
    %c0_i32_1 = arith.constant 0 : i32
    %c0_i32_2 = arith.constant 0 : i32
    return %c0_i32, %c0_i32_0, %c0_i32_1 : i32, i32, i32
  }
  func.func @transform_3(%arg0: i32) -> (i32, i32, i32) {
    %c0_i32 = arith.constant 0 : i32
    %c0_i32_0 = arith.constant 0 : i32
    %c0_i32_1 = arith.constant 0 : i32
    return %arg0, %c0_i32, %c0_i32_0 : i32, i32, i32
  }
  func.func @transform_4(%arg0: i32) -> (i32, i32, i32) {
    %c0_i32 = arith.constant 0 : i32
    %c0_i32_0 = arith.constant 0 : i32
    %c0_i32_1 = arith.constant 0 : i32
    return %arg0, %c0_i32, %c0_i32_0 : i32, i32, i32
  }
}

module attributes {stable_mosaic.version = 11 : i64} {
  func.func @_norm_res_act_kernel(%arg0: i32, %arg1: memref<1x4x256xbf16, #tpu.memory_space<vmem>>, %arg2: memref<4x1xf32, #tpu.memory_space<vmem>>, %arg3: memref<4x1xf32, #tpu.memory_space<vmem>>, %arg4: memref<1x4x256xf32, #tpu.memory_space<vmem>>, %arg5: memref<1x4x256xf32, #tpu.memory_space<vmem>>) attributes {dimension_semantics = [#tpu.dimension_semantics<parallel>], iteration_bounds = array<i64: 2>, scalar_prefetch = 0 : i64, scratch_operands = 0 : i64, tpu.core_type = #tpu.core_type<tc>, window_params = [{transform_indices = @transform_0, window_bounds = array<i64: 1, 4, 256>}, {pipeline_mode = #tpu.pipeline_mode<synchronous>, transform_indices = @transform_1, window_bounds = array<i64: 4, 1>}, {pipeline_mode = #tpu.pipeline_mode<synchronous>, transform_indices = @transform_2, window_bounds = array<i64: 4, 1>}, {transform_indices = @transform_3, window_bounds = array<i64: 1, 4, 256>}, {transform_indices = @transform_4, window_bounds = array<i64: 1, 4, 256>}]} {
    %c0 = arith.constant 0 : index
    %c0_0 = arith.constant 0 : index
    %c0_1 = arith.constant 0 : index
    %0 = vector.load %arg1[%c0, %c0_0, %c0_1] : memref<1x4x256xbf16, #tpu.memory_space<vmem>>, vector<1x4x256xbf16>
    %1 = vector.shape_cast %0 : vector<1x4x256xbf16> to vector<4x256xbf16>
    %2 = arith.extf %1 : vector<4x256xbf16> to vector<4x256xf32>
    %c0_2 = arith.constant 0 : index
    %c0_3 = arith.constant 0 : index
    %3 = vector.load %arg2[%c0_2, %c0_3] : memref<4x1xf32, #tpu.memory_space<vmem>>, vector<4x1xf32>
    %4 = vector.broadcast %3 : vector<4x1xf32> to vector<4x256xf32>
    %5 = arith.mulf %2, %4 : vector<4x256xf32>
    %c0_4 = arith.constant 0 : index
    %c0_5 = arith.constant 0 : index
    %6 = vector.load %arg3[%c0_4, %c0_5] : memref<4x1xf32, #tpu.memory_space<vmem>>, vector<4x1xf32>
    %7 = vector.broadcast %6 : vector<4x1xf32> to vector<4x256xf32>
    %8 = arith.addf %5, %7 : vector<4x256xf32>
    %c0_6 = arith.constant 0 : index
    %c0_7 = arith.constant 0 : index
    %c0_8 = arith.constant 0 : index
    %9 = vector.load %arg4[%c0_6, %c0_7, %c0_8] : memref<1x4x256xf32, #tpu.memory_space<vmem>>, vector<1x4x256xf32>
    %10 = vector.shape_cast %9 : vector<1x4x256xf32> to vector<4x256xf32>
    %11 = arith.addf %8, %10 : vector<4x256xf32>
    %cst = arith.constant 0.000000e+00 : f32
    %12 = vector.broadcast %cst : f32 to vector<4x256xf32>
    %13 = arith.cmpf oge, %11, %12 : vector<4x256xf32>
    %cst_9 = arith.constant 0.00999999977 : f32
    %14 = vector.broadcast %cst_9 : f32 to vector<4x256xf32>
    %15 = arith.mulf %14, %11 : vector<4x256xf32>
    %16 = arith.select %13, %11, %15 : vector<4x256xi1>, vector<4x256xf32>
    %c0_10 = arith.constant 0 : index
    %c0_11 = arith.constant 0 : index
    %c0_12 = arith.constant 0 : index
    %17 = vector.load %arg5[%c0_10, %c0_11, %c0_12] : memref<1x4x256xf32, #tpu.memory_space<vmem>>, vector<1x4x256xf32>
    %18 = vector.shape_cast %17 : vector<1x4x256xf32> to vector<4x256xf32>
    %19 = vector.shape_cast %16 : vector<4x256xf32> to vector<1x4x256xf32>
    tpu.vector_store %arg5[%c0_10, %c0_11, %c0_12], %19 {strides = array<i32>} : memref<1x4x256xf32, #tpu.memory_space<vmem>>, vector<1x4x256xf32>,
    return
  }
  func.func @transform_0(%arg0: i32) -> (i32, i32, i32) {
    %c0_i32 = arith.constant 0 : i32
    %c0_i32_0 = arith.constant 0 : i32
    %c0_i32_1 = arith.constant 0 : i32
    return %arg0, %c0_i32, %c0_i32_0 : i32, i32, i32
  }
  func.func @transform_1(%arg0: i32) -> (i32, i32) {
    %c0_i32 = arith.constant 0 : i32
    %c0_i32_0 = arith.constant 0 : i32
    %c0_i32_1 = arith.constant 0 : i32
    return %c0_i32, %c0_i32_0 : i32, i32
  }
  func.func @transform_2(%arg0: i32) -> (i32, i32) {
    %c0_i32 = arith.constant 0 : i32
    %c0_i32_0 = arith.constant 0 : i32
    %c0_i32_1 = arith.constant 0 : i32
    return %c0_i32, %c0_i32_0 : i32, i32
  }
  func.func @transform_3(%arg0: i32) -> (i32, i32, i32) {
    %c0_i32 = arith.constant 0 : i32
    %c0_i32_0 = arith.constant 0 : i32
    %c0_i32_1 = arith.constant 0 : i32
    return %arg0, %c0_i32, %c0_i32_0 : i32, i32, i32
  }
  func.func @transform_4(%arg0: i32) -> (i32, i32, i32) {
    %c0_i32 = arith.constant 0 : i32
    %c0_i32_0 = arith.constant 0 : i32
    %c0_i32_1 = arith.constant 0 : i32
    return %arg0, %c0_i32, %c0_i32_0 : i32, i32, i32
  }
}

module attributes {stable_mosaic.version = 11 : i64} {
  func.func @_norm_act_kernel(%arg0: i32, %arg1: memref<1x4x256xbf16, #tpu.memory_space<vmem>>, %arg2: memref<4x1xf32, #tpu.memory_space<vmem>>, %arg3: memref<4x1xf32, #tpu.memory_space<vmem>>, %arg4: memref<1x4x256xf32, #tpu.memory_space<vmem>>) attributes {dimension_semantics = [#tpu.dimension_semantics<parallel>], iteration_bounds = array<i64: 2>, scalar_prefetch = 0 : i64, scratch_operands = 0 : i64, tpu.core_type = #tpu.core_type<tc>, window_params = [{transform_indices = @transform_0, window_bounds = array<i64: 1, 4, 256>}, {pipeline_mode = #tpu.pipeline_mode<synchronous>, transform_indices = @transform_1, window_bounds = array<i64: 4, 1>}, {pipeline_mode = #tpu.pipeline_mode<synchronous>, transform_indices = @transform_2, window_bounds = array<i64: 4, 1>}, {transform_indices = @transform_3, window_bounds = array<i64: 1, 4, 256>}]} {
    %c0 = arith.constant 0 : index
    %c0_0 = arith.constant 0 : index
    %c0_1 = arith.constant 0 : index
    %0 = vector.load %arg1[%c0, %c0_0, %c0_1] : memref<1x4x256xbf16, #tpu.memory_space<vmem>>, vector<1x4x256xbf16>
    %1 = vector.shape_cast %0 : vector<1x4x256xbf16> to vector<4x256xbf16>
    %2 = arith.extf %1 : vector<4x256xbf16> to vector<4x256xf32>
    %c0_2 = arith.constant 0 : index
    %c0_3 = arith.constant 0 : index
    %3 = vector.load %arg2[%c0_2, %c0_3] : memref<4x1xf32, #tpu.memory_space<vmem>>, vector<4x1xf32>
    %4 = vector.broadcast %3 : vector<4x1xf32> to vector<4x256xf32>
    %5 = arith.mulf %2, %4 : vector<4x256xf32>
    %c0_4 = arith.constant 0 : index
    %c0_5 = arith.constant 0 : index
    %6 = vector.load %arg3[%c0_4, %c0_5] : memref<4x1xf32, #tpu.memory_space<vmem>>, vector<4x1xf32>
    %7 = vector.broadcast %6 : vector<4x1xf32> to vector<4x256xf32>
    %8 = arith.addf %5, %7 : vector<4x256xf32>
    %cst = arith.constant 0.000000e+00 : f32
    %9 = vector.broadcast %cst : f32 to vector<4x256xf32>
    %10 = arith.cmpf oge, %8, %9 : vector<4x256xf32>
    %cst_6 = arith.constant 0.00999999977 : f32
    %11 = vector.broadcast %cst_6 : f32 to vector<4x256xf32>
    %12 = arith.mulf %11, %8 : vector<4x256xf32>
    %13 = arith.select %10, %8, %12 : vector<4x256xi1>, vector<4x256xf32>
    %c0_7 = arith.constant 0 : index
    %c0_8 = arith.constant 0 : index
    %c0_9 = arith.constant 0 : index
    %14 = vector.load %arg4[%c0_7, %c0_8, %c0_9] : memref<1x4x256xf32, #tpu.memory_space<vmem>>, vector<1x4x256xf32>
    %15 = vector.shape_cast %14 : vector<1x4x256xf32> to vector<4x256xf32>
    %16 = vector.shape_cast %13 : vector<4x256xf32> to vector<1x4x256xf32>
    tpu.vector_store %arg4[%c0_7, %c0_8, %c0_9], %16 {strides = array<i32>} : memref<1x4x256xf32, #tpu.memory_space<vmem>>, vector<1x4x256xf32>,
    return
  }
  func.func @transform_0(%arg0: i32) -> (i32, i32, i32) {
    %c0_i32 = arith.constant 0 : i32
    %c0_i32_0 = arith.constant 0 : i32
    %c0_i32_1 = arith.constant 0 : i32
    return %arg0, %c0_i32, %c0_i32_0 : i32, i32, i32
  }
  func.func @transform_1(%arg0: i32) -> (i32, i32) {
    %c0_i32 = arith.constant 0 : i32
    %c0_i32_0 = arith.constant 0 : i32
    %c0_i32_1 = arith.constant 0 : i32
    return %c0_i32, %c0_i32_0 : i32, i32
  }
  func.func @transform_2(%arg0: i32) -> (i32, i32) {
    %c0_i32 = arith.constant 0 : i32
    %c0_i32_0 = arith.constant 0 : i32
    %c0_i32_1 = arith.constant 0 : i32
    return %c0_i32, %c0_i32_0 : i32, i32
  }
  func.func @transform_3(%arg0: i32) -> (i32, i32, i32) {
    %c0_i32 = arith.constant 0 : i32
    %c0_i32_0 = arith.constant 0 : i32
    %c0_i32_1 = arith.constant 0 : i32
    return %arg0, %c0_i32, %c0_i32_0 : i32, i32, i32
  }
}

</mosaic_0001>

<llo_original>
// kernel: resnet_forward.5
$region0: #{resnet_forward.5}
  #allocation0 [shape = 'u32[]', space=smem, size = 0x4, offset = 0x4, fixed_abs, tag = 'smem constant byte address 0x4 - core index']
  #allocation1 [shape = 'u32[144,128]{1,0:T(1,128)}', space=vmem, size = 0x12000, scoped, tag = 'internal scratch']
  %s0 = inlined_call_operand.vmem [shape: bf16[2,4,256], index: 0, kind: input, shape index: {}]
  %s1 = inlined_call_operand.vmem [shape: f32[4,1], index: 1, kind: input, shape index: {}]
  %s2 = inlined_call_operand.vmem [shape: f32[4,1], index: 2, kind: input, shape index: {}]
  %s3 = inlined_call_operand.vmem [shape: f32[2,4,256], index: 3, kind: output, shape index: {}]
  %s4 = sld [smem:[#allocation0]]
  $region45: #{resnet_forward.5} parent=0
    _
  %s6 = ssub.s32 1, %s4
  %s7 = scalar_select 0, %s6, %s4
  loop: start=0, step=1, limit=4
  $region2: #{resnet_forward.5} parent=0 // loop_pre_header
    _
  $region3: #{resnet_forward.5} parent=0 // loop_header
    %s9 = sphi 0, %s13
    %p10 = scmp.ge.s32.totalorder %s9, 4
    %s19 = sphi 0, %s21
    %s22 = sphi 0, %s19
    %s23 = sphi 0, %s22
    %s39 = sphi 0, %s23
    %s43 = sphi 0, %s43
    %s45 = sphi 0, %s43
    %s46 = sphi 0, %s45
    %s60 = sphi 0, %s46
    %s64 = sphi 0, %s64
    %s66 = sphi 0, %s64
    %s67 = sphi 0, %s66
    %s81 = sphi 0, %s67
    %s87 = sphi 0, %s89
    %s90 = sphi 0, %s87
    %s91 = sphi 0, %s90
    %s107 = sphi 0, %s91
  $region4: #{resnet_forward.5} parent=0 // loop_header_branch
    %12 = sbr.rel (%p10) target = $region8
  $region5: #{resnet_forward.5} parent=0 // loop_body
    %s14 = ssub.s32 %s9, 1
    %s15 = ssub.s32 %s9, 2
    %s16 = sadd.s32 %s9, 1
    %s17 = ssub.s32 %s9, %s16
    %p18 = scmp.eq.s32.totalorder %s17, 0
    %s20 = sadd.s32 %s19, 1
    %s21 = scalar_select %p18, %s19, %s20
    %p24 = pneg %p18
    %p25 = scmp.eq.s32.totalorder %s9, 1
    %p26 = por %p24, %p25
    %p27 = scmp.ne.s32.totalorder %s19, %s22
    %p28 = scmp.eq.s32.totalorder %s9, 0
    %p29 = por %p27, %p28
    %p30 = scmp.ne.s32.totalorder %s19, %s22
    %p31 = scmp.eq.s32.totalorder %s14, 1
    %p32 = por %p30, %p31
    %p33 = scmp.ne.s32.totalorder %s22, %s23
    %p34 = scmp.eq.s32.totalorder %s14, 0
    %p35 = por %p33, %p34
    %p36 = scmp.ne.s32.totalorder %s22, %s23
    %p37 = scmp.eq.s32.totalorder %s15, 1
    %p38 = por %p36, %p37
    %p40 = scmp.ne.s32.totalorder %s23, %s39
    %p41 = scmp.eq.s32.totalorder %s15, 0
    %p42 = por %p40, %p41
    %s44 = sadd.s32 %s43, 1
    %p47 = scmp.eq.s32.totalorder %s9, 1
    %p48 = scmp.ne.s32.totalorder %s43, %s45
    %p49 = scmp.eq.s32.totalorder %s9, 0
    %p50 = por %p48, %p49
    %p51 = scmp.ne.s32.totalorder %s43, %s45
    %p52 = scmp.eq.s32.totalorder %s14, 1
    %p53 = por %p51, %p52
    %p54 = scmp.ne.s32.totalorder %s45, %s46
    %p55 = scmp.eq.s32.totalorder %s14, 0
    %p56 = por %p54, %p55
    %p57 = scmp.ne.s32.totalorder %s45, %s46
    %p58 = scmp.eq.s32.totalorder %s15, 1
    %p59 = por %p57, %p58
    %p61 = scmp.ne.s32.totalorder %s46, %s60
    %p62 = scmp.eq.s32.totalorder %s15, 0
    %p63 = por %p61, %p62
    %s65 = sadd.s32 %s64, 1
    %p68 = scmp.eq.s32.totalorder %s9, 1
    %p69 = scmp.ne.s32.totalorder %s64, %s66
    %p70 = scmp.eq.s32.totalorder %s9, 0
    %p71 = por %p69, %p70
    %p72 = scmp.ne.s32.totalorder %s64, %s66
    %p73 = scmp.eq.s32.totalorder %s14, 1
    %p74 = por %p72, %p73
    %p75 = scmp.ne.s32.totalorder %s66, %s67
    %p76 = scmp.eq.s32.totalorder %s14, 0
    %p77 = por %p75, %p76
    %p78 = scmp.ne.s32.totalorder %s66, %s67
    %p79 = scmp.eq.s32.totalorder %s15, 1
    %p80 = por %p78, %p79
    %p82 = scmp.ne.s32.totalorder %s67, %s81
    %p83 = scmp.eq.s32.totalorder %s15, 0
    %p84 = por %p82, %p83
    %s85 = ssub.s32 %s9, %s16
    %p86 = scmp.eq.s32.totalorder %s85, 0
    %s88 = sadd.s32 %s87, 1
    %s89 = scalar_select %p86, %s87, %s88
    %p92 = pneg %p86
    %p93 = scmp.eq.s32.totalorder %s9, 1
    %p94 = por %p92, %p93
    %p95 = scmp.ne.s32.totalorder %s87, %s90
    %p96 = scmp.eq.s32.totalorder %s9, 0
    %p97 = por %p95, %p96
    %p98 = scmp.ne.s32.totalorder %s87, %s90
    %p99 = scmp.eq.s32.totalorder %s14, 1
    %p100 = por %p98, %p99
    %p101 = scmp.ne.s32.totalorder %s90, %s91
    %p102 = scmp.eq.s32.totalorder %s14, 0
    %p103 = por %p101, %p102
    %p104 = scmp.ne.s32.totalorder %s90, %s91
    %p105 = scmp.eq.s32.totalorder %s15, 1
    %p106 = por %p104, %p105
    %p108 = scmp.ne.s32.totalorder %s91, %s107
    %p109 = scmp.eq.s32.totalorder %s15, 0
    %p110 = por %p108, %p109
    %p111 = scmp.le.s32.totalorder 1, %s9
    %p112 = scmp.lt.s32.totalorder %s9, 3
    %p113 = pnand %p111, %p112
    %p114 = pneg %p113
    // Predicated region
    $region9: #{resnet_forward.5} parent=5 // pred_check
      _
    $region10: #{resnet_forward.5} parent=5 // pred_check_branch
      %116 = sbr.rel (%p113) target = $region12
    $region11: #{resnet_forward.5} parent=5 // pred_region
      %s117 = ssub.s32 %s9, 1
      // Predicated region
      $region13: #{resnet_forward.5} parent=11 // pred_check
        %p118 = pneg %p56
      $region14: #{resnet_forward.5} parent=11 // pred_check_branch
        %120 = sbr.rel (%p118) target = $region16
      $region15: #{resnet_forward.5} parent=11 // pred_region
        _
      $region16: #{resnet_forward.5} parent=11 // pred_fallthru
        _
      // Predicated region
      $region17: #{resnet_forward.5} parent=11 // pred_check
        %p121 = pneg %p77
      $region18: #{resnet_forward.5} parent=11 // pred_check_branch
        %123 = sbr.rel (%p121) target = $region20
      $region19: #{resnet_forward.5} parent=11 // pred_region
        _
      $region20: #{resnet_forward.5} parent=11 // pred_fallthru
        _
    $region12: #{resnet_forward.5} parent=5 // pred_fallthru
      _
    %p124 = scmp.lt.s32.totalorder %s9, 2
    // Predicated region
    $region21: #{resnet_forward.5} parent=5 // pred_check
      %p125 = pneg %p124
    $region22: #{resnet_forward.5} parent=5 // pred_check_branch
      %127 = sbr.rel (%p125) target = $region24
    $region23: #{resnet_forward.5} parent=5 // pred_region
      // Predicated region
      $region25: #{resnet_forward.5} parent=23 // pred_check
        %p128 = pneg %p29
      $region26: #{resnet_forward.5} parent=23 // pred_check_branch
        %130 = sbr.rel (%p128) target = $region28
      $region27: #{resnet_forward.5} parent=23 // pred_region
        %p131 = scmp.lt.s32.totalorder %s9, 1
        %s132 = scalar_select %p131, %s9, 1
        %s133 = smul.addr %s132, 2
        %s134 = smul.addr %s133, 2
        %s135 = scalar_lea.vmem %s0, %s134
      $region28: #{resnet_forward.5} parent=23 // pred_fallthru
        _
    $region24: #{resnet_forward.5} parent=5 // pred_fallthru
      _
    %p136 = scmp.le.s32.totalorder 1, %s9
    %p137 = scmp.lt.s32.totalorder %s9, 3
    %p138 = pnand %p136, %p137
    %p139 = pneg %p138
    // Predicated region
    $region29: #{resnet_forward.5} parent=5 // pred_check
      _
    $region30: #{resnet_forward.5} parent=5 // pred_check_branch
      %141 = sbr.rel (%p138) target = $region32
    $region31: #{resnet_forward.5} parent=5 // pred_region
      %s142 = ssub.s32 %s9, 1
      %p143 = scmp.lt.s32.totalorder %s14, 1
      %s144 = scalar_select %p143, %s14, 1
      %s145 = smul.addr %s144, 2
      %s146 = smul.addr %s145, 2
      %s147 = scalar_lea.vmem %s0, %s146
      %p148 = pneg %p35
      %p149 = pneg %p32
      %p150 = pneg %p56
      %p151 = pneg %p53
      %p152 = pneg %p77
      %p153 = pneg %p74
      %p154 = pneg %p103
      %p155 = pneg %p100
      %p156 = scmp.lt.s32.totalorder %s14, 1
      %s157 = scalar_select %p156, %s14, 1
      %s158 = smul.addr %s157, 2
      %s159 = smul.addr %s158, 4
      %s160 = scalar_lea.vmem %s3, %s159
      %p161 = scmp.lt.s32.totalorder %s14, 1
      %s162 = scalar_select %p161, %s14, 1
      %s163 = smul.addr %s162, 2
      %s164 = smul.addr %s163, 2
      %s165 = scalar_lea.vmem %s0, %s164
      %p166 = scmp.lt.s32.totalorder %s14, 1
      %s167 = scalar_select %p166, %s14, 1
      %s168 = smul.addr %s167, 2
      %s169 = smul.addr %s168, 4
      %s170 = scalar_lea.vmem %s3, %s169
      %v171 = vld [vmem:[%s165] sm:$0xf]
      %v172 = vunpack.c.l.bf16 %v171
      %v173 = vld [vmem:[%s1] sm:$0xf]
      %175 = vset.pattern.permute.xlu0 0
      %176 = vperm.xlu0 %175, %v173
      %v177 = vpop.permute.xlu0 %176
      %v179 = vunpack.c.l.s4 839922192
      %v180 = vunpack.c.0.s8 %v179
      %v181 = vlaneseq
      %v182 = vshrl.u32 %v181, 7
      %v183 = vsub.s32 %v180, %v182
      %v184 = vrot.slane %v177, %v183
      %v186 = vmul.f32 %v172, %v184
      %v187 = vld [vmem:[%s2] sm:$0xf]
      %189 = vset.pattern.permute.xlu0 0
      %190 = vperm.xlu0 %189, %v187
      %v191 = vpop.permute.xlu0 %190
      %v193 = vunpack.c.l.s4 839922192
      %v194 = vunpack.c.0.s8 %v193
      %v195 = vlaneseq
      %v196 = vshrl.u32 %v195, 7
      %v197 = vsub.s32 %v194, %v196
      %v198 = vrot.slane %v191, %v197
      %v200 = vadd.f32 %v186, %v198
      %vm201 = vcmp.ge.f32.partialorder %v200, 0.0
      %v202 = vmul.f32 %v200, 0.01
      %v203 = vsel %vm201, %v200, %v202
      %204 = vst [vmem:[%s170] sm:$0xff] %v203
      %p205 = scmp.lt.s32.totalorder %s14, 1
      %s206 = scalar_select %p205, %s14, 1
      %s207 = smul.addr %s206, 2
      %s208 = smul.addr %s207, 4
      %s209 = scalar_lea.vmem %s3, %s208
      // Predicated region
      $region33: #{resnet_forward.5} parent=31 // pred_check
        %p210 = pneg %p100
      $region34: #{resnet_forward.5} parent=31 // pred_check_branch
        %212 = sbr.rel (%p210) target = $region36
      $region35: #{resnet_forward.5} parent=31 // pred_region
        _
      $region36: #{resnet_forward.5} parent=31 // pred_fallthru
        _
    $region32: #{resnet_forward.5} parent=5 // pred_fallthru
      _
    %p213 = scmp.le.s32.totalorder 2, %s9
    // Predicated region
    $region37: #{resnet_forward.5} parent=5 // pred_check
      %p214 = pneg %p213
    $region38: #{resnet_forward.5} parent=5 // pred_check_branch
      %216 = sbr.rel (%p214) target = $region40
    $region39: #{resnet_forward.5} parent=5 // pred_region
      %s217 = ssub.s32 %s9, 2
      // Predicated region
      $region41: #{resnet_forward.5} parent=39 // pred_check
        %p218 = pneg %p106
      $region42: #{resnet_forward.5} parent=39 // pred_check_branch
        %220 = sbr.rel (%p218) target = $region44
      $region43: #{resnet_forward.5} parent=39 // pred_region
        %p221 = scmp.lt.s32.totalorder %s15, 1
        %s222 = scalar_select %p221, %s15, 1
        %s223 = smul.addr %s222, 2
        %s224 = smul.addr %s223, 4
        %s225 = scalar_lea.vmem %s3, %s224
      $region44: #{resnet_forward.5} parent=39 // pred_fallthru
        _
    $region40: #{resnet_forward.5} parent=5 // pred_fallthru
      _
  $region6: #{resnet_forward.5} parent=0 // loop_footer
    %s13 = sadd.s32 1, %s9
  $region7: #{resnet_forward.5} parent=0 // loop_footer_branch
    %8 = sbr.rel target = $region3
  $region8: #{resnet_forward.5} parent=0 // loop_exit
    _

// kernel: resnet_forward.7
$region0: #{resnet_forward.7}
  #allocation0 [shape = 'u32[]', space=smem, size = 0x4, offset = 0x4, fixed_abs, tag = 'smem constant byte address 0x4 - core index']
  #allocation1 [shape = 'u32[144,128]{1,0:T(1,128)}', space=vmem, size = 0x12000, scoped, tag = 'internal scratch']
  %s0 = inlined_call_operand.vmem [shape: bf16[2,4,256], index: 0, kind: input, shape index: {}]
  %s1 = inlined_call_operand.vmem [shape: f32[4,1], index: 1, kind: input, shape index: {}]
  %s2 = inlined_call_operand.vmem [shape: f32[4,1], index: 2, kind: input, shape index: {}]
  %s3 = inlined_call_operand.vmem [shape: f32[2,4,256], index: 3, kind: input, shape index: {}]
  %s4 = inlined_call_operand.vmem [shape: f32[2,4,256], index: 4, kind: output, shape index: {}]
  %s5 = sld [smem:[#allocation0]]
  $region49: #{resnet_forward.7} parent=0
    _
  %s7 = ssub.s32 1, %s5
  %s8 = scalar_select 0, %s7, %s5
  loop: start=0, step=1, limit=4
  $region2: #{resnet_forward.7} parent=0 // loop_pre_header
    _
  $region3: #{resnet_forward.7} parent=0 // loop_header
    %s10 = sphi 0, %s14
    %p11 = scmp.ge.s32.totalorder %s10, 4
    %s20 = sphi 0, %s22
    %s23 = sphi 0, %s20
    %s24 = sphi 0, %s23
    %s40 = sphi 0, %s24
    %s44 = sphi 0, %s44
    %s46 = sphi 0, %s44
    %s47 = sphi 0, %s46
    %s61 = sphi 0, %s47
    %s65 = sphi 0, %s65
    %s67 = sphi 0, %s65
    %s68 = sphi 0, %s67
    %s82 = sphi 0, %s68
    %s88 = sphi 0, %s90
    %s91 = sphi 0, %s88
    %s92 = sphi 0, %s91
    %s108 = sphi 0, %s92
    %s114 = sphi 0, %s116
    %s117 = sphi 0, %s114
    %s118 = sphi 0, %s117
    %s134 = sphi 0, %s118
  $region4: #{resnet_forward.7} parent=0 // loop_header_branch
    %13 = sbr.rel (%p11) target = $region8
  $region5: #{resnet_forward.7} parent=0 // loop_body
    %s15 = ssub.s32 %s10, 1
    %s16 = ssub.s32 %s10, 2
    %s17 = sadd.s32 %s10, 1
    %s18 = ssub.s32 %s10, %s17
    %p19 = scmp.eq.s32.totalorder %s18, 0
    %s21 = sadd.s32 %s20, 1
    %s22 = scalar_select %p19, %s20, %s21
    %p25 = pneg %p19
    %p26 = scmp.eq.s32.totalorder %s10, 1
    %p27 = por %p25, %p26
    %p28 = scmp.ne.s32.totalorder %s20, %s23
    %p29 = scmp.eq.s32.totalorder %s10, 0
    %p30 = por %p28, %p29
    %p31 = scmp.ne.s32.totalorder %s20, %s23
    %p32 = scmp.eq.s32.totalorder %s15, 1
    %p33 = por %p31, %p32
    %p34 = scmp.ne.s32.totalorder %s23, %s24
    %p35 = scmp.eq.s32.totalorder %s15, 0
    %p36 = por %p34, %p35
    %p37 = scmp.ne.s32.totalorder %s23, %s24
    %p38 = scmp.eq.s32.totalorder %s16, 1
    %p39 = por %p37, %p38
    %p41 = scmp.ne.s32.totalorder %s24, %s40
    %p42 = scmp.eq.s32.totalorder %s16, 0
    %p43 = por %p41, %p42
    %s45 = sadd.s32 %s44, 1
    %p48 = scmp.eq.s32.totalorder %s10, 1
    %p49 = scmp.ne.s32.totalorder %s44, %s46
    %p50 = scmp.eq.s32.totalorder %s10, 0
    %p51 = por %p49, %p50
    %p52 = scmp.ne.s32.totalorder %s44, %s46
    %p53 = scmp.eq.s32.totalorder %s15, 1
    %p54 = por %p52, %p53
    %p55 = scmp.ne.s32.totalorder %s46, %s47
    %p56 = scmp.eq.s32.totalorder %s15, 0
    %p57 = por %p55, %p56
    %p58 = scmp.ne.s32.totalorder %s46, %s47
    %p59 = scmp.eq.s32.totalorder %s16, 1
    %p60 = por %p58, %p59
    %p62 = scmp.ne.s32.totalorder %s47, %s61
    %p63 = scmp.eq.s32.totalorder %s16, 0
    %p64 = por %p62, %p63
    %s66 = sadd.s32 %s65, 1
    %p69 = scmp.eq.s32.totalorder %s10, 1
    %p70 = scmp.ne.s32.totalorder %s65, %s67
    %p71 = scmp.eq.s32.totalorder %s10, 0
    %p72 = por %p70, %p71
    %p73 = scmp.ne.s32.totalorder %s65, %s67
    %p74 = scmp.eq.s32.totalorder %s15, 1
    %p75 = por %p73, %p74
    %p76 = scmp.ne.s32.totalorder %s67, %s68
    %p77 = scmp.eq.s32.totalorder %s15, 0
    %p78 = por %p76, %p77
    %p79 = scmp.ne.s32.totalorder %s67, %s68
    %p80 = scmp.eq.s32.totalorder %s16, 1
    %p81 = por %p79, %p80
    %p83 = scmp.ne.s32.totalorder %s68, %s82
    %p84 = scmp.eq.s32.totalorder %s16, 0
    %p85 = por %p83, %p84
    %s86 = ssub.s32 %s10, %s17
    %p87 = scmp.eq.s32.totalorder %s86, 0
    %s89 = sadd.s32 %s88, 1
    %s90 = scalar_select %p87, %s88, %s89
    %p93 = pneg %p87
    %p94 = scmp.eq.s32.totalorder %s10, 1
    %p95 = por %p93, %p94
    %p96 = scmp.ne.s32.totalorder %s88, %s91
    %p97 = scmp.eq.s32.totalorder %s10, 0
    %p98 = por %p96, %p97
    %p99 = scmp.ne.s32.totalorder %s88, %s91
    %p100 = scmp.eq.s32.totalorder %s15, 1
    %p101 = por %p99, %p100
    %p102 = scmp.ne.s32.totalorder %s91, %s92
    %p103 = scmp.eq.s32.totalorder %s15, 0
    %p104 = por %p102, %p103
    %p105 = scmp.ne.s32.totalorder %s91, %s92
    %p106 = scmp.eq.s32.totalorder %s16, 1
    %p107 = por %p105, %p106
    %p109 = scmp.ne.s32.totalorder %s92, %s108
    %p110 = scmp.eq.s32.totalorder %s16, 0
    %p111 = por %p109, %p110
    %s112 = ssub.s32 %s10, %s17
    %p113 = scmp.eq.s32.totalorder %s112, 0
    %s115 = sadd.s32 %s114, 1
    %s116 = scalar_select %p113, %s114, %s115
    %p119 = pneg %p113
    %p120 = scmp.eq.s32.totalorder %s10, 1
    %p121 = por %p119, %p120
    %p122 = scmp.ne.s32.totalorder %s114, %s117
    %p123 = scmp.eq.s32.totalorder %s10, 0
    %p124 = por %p122, %p123
    %p125 = scmp.ne.s32.totalorder %s114, %s117
    %p126 = scmp.eq.s32.totalorder %s15, 1
    %p127 = por %p125, %p126
    %p128 = scmp.ne.s32.totalorder %s117, %s118
    %p129 = scmp.eq.s32.totalorder %s15, 0
    %p130 = por %p128, %p129
    %p131 = scmp.ne.s32.totalorder %s117, %s118
    %p132 = scmp.eq.s32.totalorder %s16, 1
    %p133 = por %p131, %p132
    %p135 = scmp.ne.s32.totalorder %s118, %s134
    %p136 = scmp.eq.s32.totalorder %s16, 0
    %p137 = por %p135, %p136
    %p138 = scmp.le.s32.totalorder 1, %s10
    %p139 = scmp.lt.s32.totalorder %s10, 3
    %p140 = pnand %p138, %p139
    %p141 = pneg %p140
    // Predicated region
    $region9: #{resnet_forward.7} parent=5 // pred_check
      _
    $region10: #{resnet_forward.7} parent=5 // pred_check_branch
      %143 = sbr.rel (%p140) target = $region12
    $region11: #{resnet_forward.7} parent=5 // pred_region
      %s144 = ssub.s32 %s10, 1
      // Predicated region
      $region13: #{resnet_forward.7} parent=11 // pred_check
        %p145 = pneg %p57
      $region14: #{resnet_forward.7} parent=11 // pred_check_branch
        %147 = sbr.rel (%p145) target = $region16
      $region15: #{resnet_forward.7} parent=11 // pred_region
        _
      $region16: #{resnet_forward.7} parent=11 // pred_fallthru
        _
      // Predicated region
      $region17: #{resnet_forward.7} parent=11 // pred_check
        %p148 = pneg %p78
      $region18: #{resnet_forward.7} parent=11 // pred_check_branch
        %150 = sbr.rel (%p148) target = $region20
      $region19: #{resnet_forward.7} parent=11 // pred_region
        _
      $region20: #{resnet_forward.7} parent=11 // pred_fallthru
        _
    $region12: #{resnet_forward.7} parent=5 // pred_fallthru
      _
    %p151 = scmp.lt.s32.totalorder %s10, 2
    // Predicated region
    $region21: #{resnet_forward.7} parent=5 // pred_check
      %p152 = pneg %p151
    $region22: #{resnet_forward.7} parent=5 // pred_check_branch
      %154 = sbr.rel (%p152) target = $region24
    $region23: #{resnet_forward.7} parent=5 // pred_region
      // Predicated region
      $region25: #{resnet_forward.7} parent=23 // pred_check
        %p155 = pneg %p30
      $region26: #{resnet_forward.7} parent=23 // pred_check_branch
        %157 = sbr.rel (%p155) target = $region28
      $region27: #{resnet_forward.7} parent=23 // pred_region
        %p158 = scmp.lt.s32.totalorder %s10, 1
        %s159 = scalar_select %p158, %s10, 1
        %s160 = smul.addr %s159, 2
        %s161 = smul.addr %s160, 2
        %s162 = scalar_lea.vmem %s0, %s161
      $region28: #{resnet_forward.7} parent=23 // pred_fallthru
        _
      // Predicated region
      $region29: #{resnet_forward.7} parent=23 // pred_check
        %p163 = pneg %p98
      $region30: #{resnet_forward.7} parent=23 // pred_check_branch
        %165 = sbr.rel (%p163) target = $region32
      $region31: #{resnet_forward.7} parent=23 // pred_region
        %p166 = scmp.lt.s32.totalorder %s10, 1
        %s167 = scalar_select %p166, %s10, 1
        %s168 = smul.addr %s167, 2
        %s169 = smul.addr %s168, 4
        %s170 = scalar_lea.vmem %s3, %s169
      $region32: #{resnet_forward.7} parent=23 // pred_fallthru
        _
    $region24: #{resnet_forward.7} parent=5 // pred_fallthru
      _
    %p171 = scmp.le.s32.totalorder 1, %s10
    %p172 = scmp.lt.s32.totalorder %s10, 3
    %p173 = pnand %p171, %p172
    %p174 = pneg %p173
    // Predicated region
    $region33: #{resnet_forward.7} parent=5 // pred_check
      _
    $region34: #{resnet_forward.7} parent=5 // pred_check_branch
      %176 = sbr.rel (%p173) target = $region36
    $region35: #{resnet_forward.7} parent=5 // pred_region
      %s177 = ssub.s32 %s10, 1
      %p178 = scmp.lt.s32.totalorder %s15, 1
      %s179 = scalar_select %p178, %s15, 1
      %s180 = smul.addr %s179, 2
      %s181 = smul.addr %s180, 2
      %s182 = scalar_lea.vmem %s0, %s181
      %p183 = pneg %p36
      %p184 = pneg %p33
      %p185 = pneg %p57
      %p186 = pneg %p54
      %p187 = pneg %p78
      %p188 = pneg %p75
      %p189 = scmp.lt.s32.totalorder %s15, 1
      %s190 = scalar_select %p189, %s15, 1
      %s191 = smul.addr %s190, 2
      %s192 = smul.addr %s191, 4
      %s193 = scalar_lea.vmem %s3, %s192
      %p194 = pneg %p104
      %p195 = pneg %p101
      %p196 = pneg %p130
      %p197 = pneg %p127
      %p198 = scmp.lt.s32.totalorder %s15, 1
      %s199 = scalar_select %p198, %s15, 1
      %s200 = smul.addr %s199, 2
      %s201 = smul.addr %s200, 4
      %s202 = scalar_lea.vmem %s4, %s201
      %p203 = scmp.lt.s32.totalorder %s15, 1
      %s204 = scalar_select %p203, %s15, 1
      %s205 = smul.addr %s204, 2
      %s206 = smul.addr %s205, 2
      %s207 = scalar_lea.vmem %s0, %s206
      %p208 = scmp.lt.s32.totalorder %s15, 1
      %s209 = scalar_select %p208, %s15, 1
      %s210 = smul.addr %s209, 2
      %s211 = smul.addr %s210, 4
      %s212 = scalar_lea.vmem %s3, %s211
      %p213 = scmp.lt.s32.totalorder %s15, 1
      %s214 = scalar_select %p213, %s15, 1
      %s215 = smul.addr %s214, 2
      %s216 = smul.addr %s215, 4
      %s217 = scalar_lea.vmem %s4, %s216
      %v218 = vld [vmem:[%s207] sm:$0xf]
      %v219 = vunpack.c.l.bf16 %v218
      %v220 = vld [vmem:[%s1] sm:$0xf]
      %222 = vset.pattern.permute.xlu0 0
      %223 = vperm.xlu0 %222, %v220
      %v224 = vpop.permute.xlu0 %223
      %v226 = vunpack.c.l.s4 839922192
      %v227 = vunpack.c.0.s8 %v226
      %v228 = vlaneseq
      %v229 = vshrl.u32 %v228, 7
      %v230 = vsub.s32 %v227, %v229
      %v231 = vrot.slane %v224, %v230
      %v233 = vmul.f32 %v219, %v231
      %v234 = vld [vmem:[%s2] sm:$0xf]
      %236 = vset.pattern.permute.xlu0 0
      %237 = vperm.xlu0 %236, %v234
      %v238 = vpop.permute.xlu0 %237
      %v240 = vunpack.c.l.s4 839922192
      %v241 = vunpack.c.0.s8 %v240
      %v242 = vlaneseq
      %v243 = vshrl.u32 %v242, 7
      %v244 = vsub.s32 %v241, %v243
      %v245 = vrot.slane %v238, %v244
      %v247 = vadd.f32 %v233, %v245
      %v248 = vld [vmem:[%s212] sm:$0xff]
      %v249 = vadd.f32 %v247, %v248
      %vm250 = vcmp.ge.f32.partialorder %v249, 0.0
      %v251 = vmul.f32 %v249, 0.01
      %v252 = vsel %vm250, %v249, %v251
      %253 = vst [vmem:[%s217] sm:$0xff] %v252
      %p254 = scmp.lt.s32.totalorder %s15, 1
      %s255 = scalar_select %p254, %s15, 1
      %s256 = smul.addr %s255, 2
      %s257 = smul.addr %s256, 4
      %s258 = scalar_lea.vmem %s4, %s257
      // Predicated region
      $region37: #{resnet_forward.7} parent=35 // pred_check
        %p259 = pneg %p127
      $region38: #{resnet_forward.7} parent=35 // pred_check_branch
        %261 = sbr.rel (%p259) target = $region40
      $region39: #{resnet_forward.7} parent=35 // pred_region
        _
      $region40: #{resnet_forward.7} parent=35 // pred_fallthru
        _
    $region36: #{resnet_forward.7} parent=5 // pred_fallthru
      _
    %p262 = scmp.le.s32.totalorder 2, %s10
    // Predicated region
    $region41: #{resnet_forward.7} parent=5 // pred_check
      %p263 = pneg %p262
    $region42: #{resnet_forward.7} parent=5 // pred_check_branch
      %265 = sbr.rel (%p263) target = $region44
    $region43: #{resnet_forward.7} parent=5 // pred_region
      %s266 = ssub.s32 %s10, 2
      // Predicated region
      $region45: #{resnet_forward.7} parent=43 // pred_check
        %p267 = pneg %p133
      $region46: #{resnet_forward.7} parent=43 // pred_check_branch
        %269 = sbr.rel (%p267) target = $region48
      $region47: #{resnet_forward.7} parent=43 // pred_region
        %p270 = scmp.lt.s32.totalorder %s16, 1
        %s271 = scalar_select %p270, %s16, 1
        %s272 = smul.addr %s271, 2
        %s273 = smul.addr %s272, 4
        %s274 = scalar_lea.vmem %s4, %s273
      $region48: #{resnet_forward.7} parent=43 // pred_fallthru
        _
    $region44: #{resnet_forward.7} parent=5 // pred_fallthru
      _
  $region6: #{resnet_forward.7} parent=0 // loop_footer
    %s14 = sadd.s32 1, %s10
  $region7: #{resnet_forward.7} parent=0 // loop_footer_branch
    %9 = sbr.rel target = $region3
  $region8: #{resnet_forward.7} parent=0 // loop_exit
    _

// kernel: resnet_forward.4
$region0: #{resnet_forward.4}
  #allocation0 [shape = 'u32[]', space=smem, size = 0x4, offset = 0x4, fixed_abs, tag = 'smem constant byte address 0x4 - core index']
  #allocation1 [shape = 'u32[144,128]{1,0:T(1,128)}', space=vmem, size = 0x12000, scoped, tag = 'internal scratch']
  #allocation2 [shape = 'bf16[4,290]{1,0:T(4,128)(2,1)}', space=vmem, size = 0xc00, scoped, tag = 'scratch operand']
  %s0 = inlined_call_operand.vmem [shape: f32[2,4,256], index: 0, kind: input, shape index: {}]
  %s1 = inlined_call_operand.vmem [shape: bf16[9,4,4], index: 1, kind: input, shape index: {}]
  %s2 = inlined_call_operand.vmem [shape: bf16[2,1,256], index: 2, kind: input, shape index: {}]
  %s3 = inlined_call_operand.vmem [shape: bf16[2,4,256], index: 3, kind: output, shape index: {0}]
  %s4 = inlined_call_operand.vmem [shape: f32[2,4,2], index: 4, kind: output, shape index: {1}]
  %5 = xla_tuple %s3, %s4
  %s6 = sld [smem:[#allocation0]]
  $region53: #{resnet_forward.4} parent=0
    _
  %s8 = ssub.s32 1, %s6
  %s9 = scalar_select 0, %s8, %s6
  loop: start=0, step=1, limit=4
  $region2: #{resnet_forward.4} parent=0 // loop_pre_header
    _
  $region3: #{resnet_forward.4} parent=0 // loop_header
    %s11 = sphi 0, %s15
    %p12 = scmp.ge.s32.totalorder %s11, 4
    %s21 = sphi 0, %s23
    %s24 = sphi 0, %s21
    %s25 = sphi 0, %s24
    %s41 = sphi 0, %s25
    %s45 = sphi 0, %s45
    %s47 = sphi 0, %s45
    %s48 = sphi 0, %s47
    %s62 = sphi 0, %s48
    %s66 = sphi 0, %s66
    %s68 = sphi 0, %s66
    %s69 = sphi 0, %s68
    %s83 = sphi 0, %s69
    %s89 = sphi 0, %s91
    %s92 = sphi 0, %s89
    %s93 = sphi 0, %s92
    %s109 = sphi 0, %s93
    %s115 = sphi 0, %s117
    %s118 = sphi 0, %s115
    %s119 = sphi 0, %s118
    %s135 = sphi 0, %s119
  $region4: #{resnet_forward.4} parent=0 // loop_header_branch
    %14 = sbr.rel (%p12) target = $region8
  $region5: #{resnet_forward.4} parent=0 // loop_body
    %s16 = ssub.s32 %s11, 1
    %s17 = ssub.s32 %s11, 2
    %s18 = sadd.s32 %s11, 1
    %s19 = ssub.s32 %s11, %s18
    %p20 = scmp.eq.s32.totalorder %s19, 0
    %s22 = sadd.s32 %s21, 1
    %s23 = scalar_select %p20, %s21, %s22
    %p26 = pneg %p20
    %p27 = scmp.eq.s32.totalorder %s11, 1
    %p28 = por %p26, %p27
    %p29 = scmp.ne.s32.totalorder %s21, %s24
    %p30 = scmp.eq.s32.totalorder %s11, 0
    %p31 = por %p29, %p30
    %p32 = scmp.ne.s32.totalorder %s21, %s24
    %p33 = scmp.eq.s32.totalorder %s16, 1
    %p34 = por %p32, %p33
    %p35 = scmp.ne.s32.totalorder %s24, %s25
    %p36 = scmp.eq.s32.totalorder %s16, 0
    %p37 = por %p35, %p36
    %p38 = scmp.ne.s32.totalorder %s24, %s25
    %p39 = scmp.eq.s32.totalorder %s17, 1
    %p40 = por %p38, %p39
    %p42 = scmp.ne.s32.totalorder %s25, %s41
    %p43 = scmp.eq.s32.totalorder %s17, 0
    %p44 = por %p42, %p43
    %s46 = sadd.s32 %s45, 1
    %p49 = scmp.eq.s32.totalorder %s11, 1
    %p50 = scmp.ne.s32.totalorder %s45, %s47
    %p51 = scmp.eq.s32.totalorder %s11, 0
    %p52 = por %p50, %p51
    %p53 = scmp.ne.s32.totalorder %s45, %s47
    %p54 = scmp.eq.s32.totalorder %s16, 1
    %p55 = por %p53, %p54
    %p56 = scmp.ne.s32.totalorder %s47, %s48
    %p57 = scmp.eq.s32.totalorder %s16, 0
    %p58 = por %p56, %p57
    %p59 = scmp.ne.s32.totalorder %s47, %s48
    %p60 = scmp.eq.s32.totalorder %s17, 1
    %p61 = por %p59, %p60
    %p63 = scmp.ne.s32.totalorder %s48, %s62
    %p64 = scmp.eq.s32.totalorder %s17, 0
    %p65 = por %p63, %p64
    %s67 = sadd.s32 %s66, 1
    %p70 = scmp.eq.s32.totalorder %s11, 1
    %p71 = scmp.ne.s32.totalorder %s66, %s68
    %p72 = scmp.eq.s32.totalorder %s11, 0
    %p73 = por %p71, %p72
    %p74 = scmp.ne.s32.totalorder %s66, %s68
    %p75 = scmp.eq.s32.totalorder %s16, 1
    %p76 = por %p74, %p75
    %p77 = scmp.ne.s32.totalorder %s68, %s69
    %p78 = scmp.eq.s32.totalorder %s16, 0
    %p79 = por %p77, %p78
    %p80 = scmp.ne.s32.totalorder %s68, %s69
    %p81 = scmp.eq.s32.totalorder %s17, 1
    %p82 = por %p80, %p81
    %p84 = scmp.ne.s32.totalorder %s69, %s83
    %p85 = scmp.eq.s32.totalorder %s17, 0
    %p86 = por %p84, %p85
    %s87 = ssub.s32 %s11, %s18
    %p88 = scmp.eq.s32.totalorder %s87, 0
    %s90 = sadd.s32 %s89, 1
    %s91 = scalar_select %p88, %s89, %s90
    %p94 = pneg %p88
    %p95 = scmp.eq.s32.totalorder %s11, 1
    %p96 = por %p94, %p95
    %p97 = scmp.ne.s32.totalorder %s89, %s92
    %p98 = scmp.eq.s32.totalorder %s11, 0
    %p99 = por %p97, %p98
    %p100 = scmp.ne.s32.totalorder %s89, %s92
    %p101 = scmp.eq.s32.totalorder %s16, 1
    %p102 = por %p100, %p101
    %p103 = scmp.ne.s32.totalorder %s92, %s93
    %p104 = scmp.eq.s32.totalorder %s16, 0
    %p105 = por %p103, %p104
    %p106 = scmp.ne.s32.totalorder %s92, %s93
    %p107 = scmp.eq.s32.totalorder %s17, 1
    %p108 = por %p106, %p107
    %p110 = scmp.ne.s32.totalorder %s93, %s109
    %p111 = scmp.eq.s32.totalorder %s17, 0
    %p112 = por %p110, %p111
    %s113 = ssub.s32 %s11, %s18
    %p114 = scmp.eq.s32.totalorder %s113, 0
    %s116 = sadd.s32 %s115, 1
    %s117 = scalar_select %p114, %s115, %s116
    %p120 = pneg %p114
    %p121 = scmp.eq.s32.totalorder %s11, 1
    %p122 = por %p120, %p121
    %p123 = scmp.ne.s32.totalorder %s115, %s118
    %p124 = scmp.eq.s32.totalorder %s11, 0
    %p125 = por %p123, %p124
    %p126 = scmp.ne.s32.totalorder %s115, %s118
    %p127 = scmp.eq.s32.totalorder %s16, 1
    %p128 = por %p126, %p127
    %p129 = scmp.ne.s32.totalorder %s118, %s119
    %p130 = scmp.eq.s32.totalorder %s16, 0
    %p131 = por %p129, %p130
    %p132 = scmp.ne.s32.totalorder %s118, %s119
    %p133 = scmp.eq.s32.totalorder %s17, 1
    %p134 = por %p132, %p133
    %p136 = scmp.ne.s32.totalorder %s119, %s135
    %p137 = scmp.eq.s32.totalorder %s17, 0
    %p138 = por %p136, %p137
    %p139 = scmp.le.s32.totalorder 1, %s11
    %p140 = scmp.lt.s32.totalorder %s11, 3
    %p141 = pnand %p139, %p140
    %p142 = pneg %p141
    // Predicated region
    $region9: #{resnet_forward.4} parent=5 // pred_check
      _
    $region10: #{resnet_forward.4} parent=5 // pred_check_branch
      %144 = sbr.rel (%p141) target = $region12
    $region11: #{resnet_forward.4} parent=5 // pred_region
      %s145 = ssub.s32 %s11, 1
      // Predicated region
      $region13: #{resnet_forward.4} parent=11 // pred_check
        %p146 = pneg %p58
      $region14: #{resnet_forward.4} parent=11 // pred_check_branch
        %148 = sbr.rel (%p146) target = $region16
      $region15: #{resnet_forward.4} parent=11 // pred_region
        _
      $region16: #{resnet_forward.4} parent=11 // pred_fallthru
        _
      // Predicated region
      $region17: #{resnet_forward.4} parent=11 // pred_check
        %p149 = pneg %p79
      $region18: #{resnet_forward.4} parent=11 // pred_check_branch
        %151 = sbr.rel (%p149) target = $region20
      $region19: #{resnet_forward.4} parent=11 // pred_region
        _
      $region20: #{resnet_forward.4} parent=11 // pred_fallthru
        _
    $region12: #{resnet_forward.4} parent=5 // pred_fallthru
      _
    %p152 = scmp.lt.s32.totalorder %s11, 2
    // Predicated region
    $region21: #{resnet_forward.4} parent=5 // pred_check
      %p153 = pneg %p152
    $region22: #{resnet_forward.4} parent=5 // pred_check_branch
      %155 = sbr.rel (%p153) target = $region24
    $region23: #{resnet_forward.4} parent=5 // pred_region
      // Predicated region
      $region25: #{resnet_forward.4} parent=23 // pred_check
        %p156 = pneg %p31
      $region26: #{resnet_forward.4} parent=23 // pred_check_branch
        %158 = sbr.rel (%p156) target = $region28
      $region27: #{resnet_forward.4} parent=23 // pred_region
        %p159 = scmp.lt.s32.totalorder %s11, 1
        %s160 = scalar_select %p159, %s11, 1
        %s161 = smul.addr %s160, 2
        %s162 = smul.addr %s161, 4
        %s163 = scalar_lea.vmem %s0, %s162
      $region28: #{resnet_forward.4} parent=23 // pred_fallthru
        _
    $region24: #{resnet_forward.4} parent=5 // pred_fallthru
      _
    %p164 = scmp.le.s32.totalorder 1, %s11
    %p165 = scmp.lt.s32.totalorder %s11, 3
    %p166 = pnand %p164, %p165
    %p167 = pneg %p166
    // Predicated region
    $region29: #{resnet_forward.4} parent=5 // pred_check
      _
    $region30: #{resnet_forward.4} parent=5 // pred_check_branch
      %169 = sbr.rel (%p166) target = $region32
    $region31: #{resnet_forward.4} parent=5 // pred_region
      %s170 = ssub.s32 %s11, 1
      %p171 = scmp.lt.s32.totalorder %s16, 1
      %s172 = scalar_select %p171, %s16, 1
      %s173 = smul.addr %s172, 2
      %s174 = smul.addr %s173, 4
      %s175 = scalar_lea.vmem %s0, %s174
      %p176 = pneg %p37
      %p177 = pneg %p34
      %p178 = pneg %p58
      %p179 = pneg %p55
      %p180 = pneg %p79
      %p181 = pneg %p76
      %p182 = pneg %p105
      %p183 = pneg %p102
      %p184 = scmp.lt.s32.totalorder %s16, 1
      %s185 = scalar_select %p184, %s16, 1
      %s186 = smul.addr %s185, 2
      %s187 = smul.addr %s186, 2
      %s188 = scalar_lea.vmem %s3, %s187
      %p189 = pneg %p131
      %p190 = pneg %p128
      %p191 = scmp.lt.s32.totalorder %s16, 1
      %s192 = scalar_select %p191, %s16, 1
      %s193 = smul.addr %s192, 4
      %s194 = scalar_lea.vmem %s4, %s193
      %p195 = scmp.lt.s32.totalorder %s16, 1
      %s196 = scalar_select %p195, %s16, 1
      %s197 = smul.addr %s196, 2
      %s198 = smul.addr %s197, 4
      %s199 = scalar_lea.vmem %s0, %s198
      %p200 = scmp.lt.s32.totalorder %s16, 1
      %s201 = scalar_select %p200, %s16, 1
      %s202 = smul.addr %s201, 2
      %s203 = smul.addr %s202, 2
      %s204 = scalar_lea.vmem %s3, %s203
      %p205 = scmp.lt.s32.totalorder %s16, 1
      %s206 = scalar_select %p205, %s16, 1
      %s207 = smul.addr %s206, 4
      %s208 = scalar_lea.vmem %s4, %s207
      %vm210 = vcmask 132096
      %211 = vst.msk [vmem:[#allocation2] sm:$0x3] %vm210, 0
      %vm212 = vcmask 271496
      %213 = vst.msk [vmem:[#allocation2 + $0x4] sm:$0x3] %vm212, 0
      %v214 = vld [vmem:[%s199] sm:$0xff]
      %v216 = vcombine.high %v214, %v214
      %v218 = vpack.c.bf16 %v214, %v214
      %v219 = vpack.c.bf16 %v216, %v216
      %v222 = vcombine.low %v218, %v219
      %v224 = vunpack.c.l.s4 1983009808
      %v225 = vunpack.c.0.s8 %v224
      %v226 = vlaneseq
      %v227 = vshrl.u32 %v226, 7
      %v228 = vsub.s32 %v225, %v227
      %v229 = vrot.slane %v222, %v228
      %230 = vrot.lane.b32.xlu0 %v229, 17
      %v231 = vpop.permute.xlu0 %230
      %v232 = vrot.slane %v231, 6
      %vm233 = vcmask 138240
      %v234 = vsel %vm233, %v232, %v231
      %vm236 = vcmask 1041544
      %vm237 = vcmask 1043458
      %vm238 = vmor %vm237, %vm236
      %vm239 = vcmask 136196
      %vm240 = vmor %vm239, %vm238
      %241 = vst.msk [vmem:[#allocation2] sm:$0x3f] %vm240, %v234
      %v242 = vld [vmem:[#allocation2] sm:$0xf]
      %v243 = vld [vmem:[%s2] sm:$0x3]
      %v246 = vunpack.c.l.s4 1966171168
      %v247 = vunpack.c.0.s8 %v246
      %v248 = vlaneseq
      %v249 = vshrl.u32 %v248, 7
      %v250 = vsub.s32 %v247, %v249
      %v251 = vrot.slane %v243, %v250
      %v252 = vcombine.high %v251, %v251
      %v254 = vunpack.c.l.s4 1966171168
      %v255 = vunpack.c.0.s8 %v254
      %v256 = vlaneseq
      %v257 = vshrl.u32 %v256, 7
      %v258 = vsub.s32 %v255, %v257
      %v259 = vrot.slane %v251, %v258
      %v261 = vunpack.c.l.s4 1966171168
      %v262 = vunpack.c.0.s8 %v261
      %v263 = vlaneseq
      %v264 = vshrl.u32 %v263, 7
      %v265 = vsub.s32 %v262, %v264
      %v266 = vrot.slane %v252, %v265
      %v268 = vpack.i.b16 %v259, %v259
      %v270 = vlaneseq
      %v271 = vshrl.u32 %v270, 7
      %v272 = vsub.s32 0, %v271
      %v273 = vrot.slane %v268, %v272
      %v275 = vpack.i.b16 %v266, %v266
      %v277 = vlaneseq
      %v278 = vshrl.u32 %v277, 7
      %v279 = vsub.s32 0, %v278
      %v280 = vrot.slane %v275, %v279
      %v283 = vcombine.low %v273, %v280
      %v285 = vunpack.c.l.s4 1983009808
      %v286 = vunpack.c.0.s8 %v285
      %v287 = vlaneseq
      %v288 = vshrl.u32 %v287, 7
      %v289 = vsub.s32 %v286, %v288
      %v290 = vrot.slane %v283, %v289
      %v292 = vmul.bf16 %v242, %v290
      %v293 = vld [vmem:[%s1] sm:$0x3]
      %v294 = vld [vmem:[#allocation2] sm:$0x3f]
      %s295 = scalar_lea.vmem %s1, 2
      %v296 = vld [vmem:[%s295] sm:$0x3]
      %v298 = vcombine.high %v294, %v294
      %v300 = vunpack.c.l.s4 1983009808
      %v301 = vunpack.c.0.s8 %v300
      %v302 = vlaneseq
      %v303 = vshrl.u32 %v302, 7
      %v304 = vsub.s32 %v301, %v303
      %v305 = vrot.slane %v294, %v304
      %v307 = vunpack.c.l.s4 1983009808
      %v308 = vunpack.c.0.s8 %v307
      %v309 = vlaneseq
      %v310 = vshrl.u32 %v309, 7
      %v311 = vsub.s32 %v308, %v310
      %v312 = vrot.slane %v298, %v311
      %v313 = vcombine.high %v305, %v305
      %314 = vrot.lane.b32.xlu0 %v305, 127
      %v315 = vpop.permute.xlu0 %314
      %316 = vrot.lane.b32.xlu0 %v313, 127
      %v317 = vpop.permute.xlu0 %316
      %318 = vrot.lane.b32.xlu0 %v312, 127
      %v319 = vpop.permute.xlu0 %318
      %vm320 = vcmask 1039360
      %v321 = vsel %vm320, %v315, %v317
      %v322 = vsel %vm320, %v317, %v319
      %vm323 = vcmask 31744
      %v325 = vsel %vm323, %v296, 0
      %vm327 = vcmask 1041408
      %v329 = vsel %vm327, %v321, 0
      %v332 = vsel %vm327, %v322, 0
      %334 = vmatprep.subr.bf16.mxu0 %v332
      %335 = vmatpush1.bf16.msra.mxu0 %v329
      %336 = vmatprep.subr.bf16.mxu0 0
      %337 = vmatpush1.bf16.msra.mxu0 0
      %338 = vmatprep.subr.bf16.mxu0 0
      %339 = vmatpush1.bf16.msra.mxu0 0
      %340 = vmatprep.subr.bf16.mxu0 0
      %341 = vmatpush1.bf16.msra.mxu0 0
      %342 = vmatprep.subr.bf16.mxu0 0
      %343 = vmatpush1.bf16.msra.mxu0 0
      %344 = vmatprep.subr.bf16.mxu0 0
      %345 = vmatpush1.bf16.msra.mxu0 0
      %346 = vmatprep.subr.bf16.mxu0 0
      %347 = vmatpush1.bf16.msra.mxu0 0
      %348 = vmatprep.subr.bf16.mxu0 0
      %349 = vmatpush1.bf16.msra.mxu0 0
      %350 = vmatprep.subr.bf16.mxu0 0
      %351 = vmatpush1.bf16.msra.mxu0 0
      %352 = vmatprep.subr.bf16.mxu0 0
      %353 = vmatpush1.bf16.msra.mxu0 0
      %354 = vmatprep.subr.bf16.mxu0 0
      %355 = vmatpush1.bf16.msra.mxu0 0
      %356 = vmatprep.subr.bf16.mxu0 0
      %357 = vmatpush1.bf16.msra.mxu0 0
      %358 = vmatprep.subr.bf16.mxu0 0
      %359 = vmatpush1.bf16.msra.mxu0 0
      %360 = vmatprep.subr.bf16.mxu0 0
      %361 = vmatpush1.bf16.msra.mxu0 0
      %362 = vmatprep.subr.bf16.mxu0 0
      %363 = vmatpush1.bf16.msra.mxu0 0
      %364 = vmatprep.subr.bf16.mxu0 0
      %365 = vmatpush1.bf16.msra.mxu0 0
      %366 = vmatprep.mubr.bf16.mxu0 0
      %367 = vmatmul.mubr.bf16.gmra.mrb[0].mxu0 %v325
      %v368 = vpop.f32.mrb[0].mxu0
      %v369 = vadd.f32 0.0, %v368
      %v370 = vpop.f32.mrb[0].mxu0
      %v371 = vadd.f32 0.0, %v370
      %v372 = vpop.f32.mrb[0].mxu0
      %v373 = vpop.f32.mrb[0].mxu0
      %374 = vdwg.mxu0
      %v377 = vunpack.c.l.s4 1983009808
      %v378 = vunpack.c.0.s8 %v377
      %v379 = vlaneseq
      %v380 = vshrl.u32 %v379, 7
      %v381 = vsub.s32 %v378, %v380
      %v382 = vrot.slane %v292, %v381
      %v383 = vcombine.high %v382, %v382
      %v385 = vsel %vm323, %v293, 0
      %v388 = vsel %vm327, %v382, 0
      %v391 = vsel %vm327, %v383, 0
      %393 = vmatprep.subr.bf16.mxu0 %v391
      %394 = vmatpush1.bf16.msra.mxu0 %v388
      %395 = vmatprep.subr.bf16.mxu0 0
      %396 = vmatpush1.bf16.msra.mxu0 0
      %397 = vmatprep.subr.bf16.mxu0 0
      %398 = vmatpush1.bf16.msra.mxu0 0
      %399 = vmatprep.subr.bf16.mxu0 0
      %400 = vmatpush1.bf16.msra.mxu0 0
      %401 = vmatprep.subr.bf16.mxu0 0
      %402 = vmatpush1.bf16.msra.mxu0 0
      %403 = vmatprep.subr.bf16.mxu0 0
      %404 = vmatpush1.bf16.msra.mxu0 0
      %405 = vmatprep.subr.bf16.mxu0 0
      %406 = vmatpush1.bf16.msra.mxu0 0
      %407 = vmatprep.subr.bf16.mxu0 0
      %408 = vmatpush1.bf16.msra.mxu0 0
      %409 = vmatprep.subr.bf16.mxu0 0
      %410 = vmatpush1.bf16.msra.mxu0 0
      %411 = vmatprep.subr.bf16.mxu0 0
      %412 = vmatpush1.bf16.msra.mxu0 0
      %413 = vmatprep.subr.bf16.mxu0 0
      %414 = vmatpush1.bf16.msra.mxu0 0
      %415 = vmatprep.subr.bf16.mxu0 0
      %416 = vmatpush1.bf16.msra.mxu0 0
      %417 = vmatprep.subr.bf16.mxu0 0
      %418 = vmatpush1.bf16.msra.mxu0 0
      %419 = vmatprep.subr.bf16.mxu0 0
      %420 = vmatpush1.bf16.msra.mxu0 0
      %421 = vmatprep.subr.bf16.mxu0 0
      %422 = vmatpush1.bf16.msra.mxu0 0
      %423 = vmatprep.subr.bf16.mxu0 0
      %424 = vmatpush1.bf16.msra.mxu0 0
      %425 = vmatprep.mubr.bf16.mxu0 0
      %426 = vmatmul.mubr.bf16.gmra.mrb[0].mxu0 %v385
      %v427 = vpop.f32.mrb[0].mxu0
      %v428 = vadd.f32 %v369, %v427
      %v429 = vpop.f32.mrb[0].mxu0
      %v430 = vadd.f32 %v371, %v429
      %v431 = vpop.f32.mrb[0].mxu0
      %v432 = vpop.f32.mrb[0].mxu0
      %433 = vdwg.mxu0
      %v434 = vld [vmem:[#allocation2] sm:$0x3f]
      %s435 = scalar_lea.vmem %s2, 2
      %v436 = vld [vmem:[%s435] sm:$0x3]
      %v439 = vunpack.c.l.s4 1966171168
      %v440 = vunpack.c.0.s8 %v439
      %v441 = vlaneseq
      %v442 = vshrl.u32 %v441, 7
      %v443 = vsub.s32 %v440, %v442
      %v444 = vrot.slane %v436, %v443
      %v445 = vcombine.high %v444, %v444
      %v447 = vunpack.c.l.s4 1966171168
      %v448 = vunpack.c.0.s8 %v447
      %v449 = vlaneseq
      %v450 = vshrl.u32 %v449, 7
      %v451 = vsub.s32 %v448, %v450
      %v452 = vrot.slane %v444, %v451
      %v454 = vunpack.c.l.s4 1966171168
      %v455 = vunpack.c.0.s8 %v454
      %v456 = vlaneseq
      %v457 = vshrl.u32 %v456, 7
      %v458 = vsub.s32 %v455, %v457
      %v459 = vrot.slane %v445, %v458
      %v461 = vpack.i.b16 %v452, %v452
      %v463 = vlaneseq
      %v464 = vshrl.u32 %v463, 7
      %v465 = vsub.s32 0, %v464
      %v466 = vrot.slane %v461, %v465
      %v468 = vpack.i.b16 %v459, %v459
      %v470 = vlaneseq
      %v471 = vshrl.u32 %v470, 7
      %v472 = vsub.s32 0, %v471
      %v473 = vrot.slane %v468, %v472
      %v476 = vcombine.low %v466, %v473
      %v478 = vunpack.c.l.s4 1983009808
      %v479 = vunpack.c.0.s8 %v478
      %v480 = vlaneseq
      %v481 = vshrl.u32 %v480, 7
      %v482 = vsub.s32 %v479, %v481
      %v483 = vrot.slane %v476, %v482
      %484 = vrot.lane.b32.xlu0 %v483, 2
      %v485 = vpop.permute.xlu0 %484
      %v486 = vrot.slane %v485, 6
      %vm487 = vcmask 15360
      %v488 = vsel %vm487, %v486, %v485
      %v490 = vmul.bf16 %v434, %v488
      %s491 = scalar_lea.vmem %s1, 4
      %v492 = vld [vmem:[%s491] sm:$0x3]
      %v494 = vcombine.high %v490, %v490
      %v496 = vunpack.c.l.s4 1983009808
      %v497 = vunpack.c.0.s8 %v496
      %v498 = vlaneseq
      %v499 = vshrl.u32 %v498, 7
      %v500 = vsub.s32 %v497, %v499
      %v501 = vrot.slane %v490, %v500
      %v503 = vunpack.c.l.s4 1983009808
      %v504 = vunpack.c.0.s8 %v503
      %v505 = vlaneseq
      %v506 = vshrl.u32 %v505, 7
      %v507 = vsub.s32 %v504, %v506
      %v508 = vrot.slane %v494, %v507
      %v509 = vcombine.high %v501, %v501
      %510 = vrot.lane.b32.xlu0 %v501, 126
      %v511 = vpop.permute.xlu0 %510
      %512 = vrot.lane.b32.xlu0 %v509, 126
      %v513 = vpop.permute.xlu0 %512
      %514 = vrot.lane.b32.xlu0 %v508, 126
      %v515 = vpop.permute.xlu0 %514
      %vm516 = vcmask 1031168
      %v517 = vsel %vm516, %v511, %v513
      %v518 = vsel %vm516, %v513, %v515
      %v520 = vsel %vm323, %v492, 0
      %v523 = vsel %vm327, %v517, 0
      %v526 = vsel %vm327, %v518, 0
      %528 = vmatprep.subr.bf16.mxu0 %v526
      %529 = vmatpush1.bf16.msra.mxu0 %v523
      %530 = vmatprep.subr.bf16.mxu0 0
      %531 = vmatpush1.bf16.msra.mxu0 0
      %532 = vmatprep.subr.bf16.mxu0 0
      %533 = vmatpush1.bf16.msra.mxu0 0
      %534 = vmatprep.subr.bf16.mxu0 0
      %535 = vmatpush1.bf16.msra.mxu0 0
      %536 = vmatprep.subr.bf16.mxu0 0
      %537 = vmatpush1.bf16.msra.mxu0 0
      %538 = vmatprep.subr.bf16.mxu0 0
      %539 = vmatpush1.bf16.msra.mxu0 0
      %540 = vmatprep.subr.bf16.mxu0 0
      %541 = vmatpush1.bf16.msra.mxu0 0
      %542 = vmatprep.subr.bf16.mxu0 0
      %543 = vmatpush1.bf16.msra.mxu0 0
      %544 = vmatprep.subr.bf16.mxu0 0
      %545 = vmatpush1.bf16.msra.mxu0 0
      %546 = vmatprep.subr.bf16.mxu0 0
      %547 = vmatpush1.bf16.msra.mxu0 0
      %548 = vmatprep.subr.bf16.mxu0 0
      %549 = vmatpush1.bf16.msra.mxu0 0
      %550 = vmatprep.subr.bf16.mxu0 0
      %551 = vmatpush1.bf16.msra.mxu0 0
      %552 = vmatprep.subr.bf16.mxu0 0
      %553 = vmatpush1.bf16.msra.mxu0 0
      %554 = vmatprep.subr.bf16.mxu0 0
      %555 = vmatpush1.bf16.msra.mxu0 0
      %556 = vmatprep.subr.bf16.mxu0 0
      %557 = vmatpush1.bf16.msra.mxu0 0
      %558 = vmatprep.subr.bf16.mxu0 0
      %559 = vmatpush1.bf16.msra.mxu0 0
      %560 = vmatprep.mubr.bf16.mxu0 0
      %561 = vmatmul.mubr.bf16.gmra.mrb[0].mxu0 %v520
      %v562 = vpop.f32.mrb[0].mxu0
      %v563 = vadd.f32 0.0, %v562
      %v564 = vpop.f32.mrb[0].mxu0
      %v565 = vadd.f32 0.0, %v564
      %v566 = vpop.f32.mrb[0].mxu0
      %v567 = vpop.f32.mrb[0].mxu0
      %568 = vdwg.mxu0
      %v569 = vadd.f32 %v428, %v563
      %v570 = vadd.f32 %v430, %v565
      %v571 = vld [vmem:[#allocation2] sm:$0x3f]
      %572 = vrot.lane.b32.xlu0 %v290, 16
      %v573 = vpop.permute.xlu0 %572
      %v574 = vrot.slane %v573, 6
      %vm575 = vcmask 130048
      %v576 = vsel %vm575, %v574, %v573
      %v578 = vmul.bf16 %v571, %v576
      %s579 = scalar_lea.vmem %s1, 6
      %v580 = vld [vmem:[%s579] sm:$0x3]
      %v582 = vcombine.high %v578, %v578
      %v584 = vunpack.c.l.s4 1983009808
      %v585 = vunpack.c.0.s8 %v584
      %v586 = vlaneseq
      %v587 = vshrl.u32 %v586, 7
      %v588 = vsub.s32 %v585, %v587
      %v589 = vrot.slane %v578, %v588
      %v591 = vunpack.c.l.s4 1983009808
      %v592 = vunpack.c.0.s8 %v591
      %v593 = vlaneseq
      %v594 = vshrl.u32 %v593, 7
      %v595 = vsub.s32 %v592, %v594
      %v596 = vrot.slane %v582, %v595
      %v597 = vcombine.high %v589, %v589
      %598 = vrot.lane.b32.xlu0 %v589, 112
      %v599 = vpop.permute.xlu0 %598
      %600 = vrot.lane.b32.xlu0 %v597, 112
      %v601 = vpop.permute.xlu0 %600
      %602 = vrot.lane.b32.xlu0 %v596, 112
      %v603 = vpop.permute.xlu0 %602
      %vm604 = vcmask 916480
      %v605 = vsel %vm604, %v599, %v601
      %v606 = vsel %vm604, %v601, %v603
      %v608 = vsel %vm323, %v580, 0
      %v611 = vsel %vm327, %v605, 0
      %v614 = vsel %vm327, %v606, 0
      %616 = vmatprep.subr.bf16.mxu0 %v614
      %617 = vmatpush1.bf16.msra.mxu0 %v611
      %618 = vmatprep.subr.bf16.mxu0 0
      %619 = vmatpush1.bf16.msra.mxu0 0
      %620 = vmatprep.subr.bf16.mxu0 0
      %621 = vmatpush1.bf16.msra.mxu0 0
      %622 = vmatprep.subr.bf16.mxu0 0
      %623 = vmatpush1.bf16.msra.mxu0 0
      %624 = vmatprep.subr.bf16.mxu0 0
      %625 = vmatpush1.bf16.msra.mxu0 0
      %626 = vmatprep.subr.bf16.mxu0 0
      %627 = vmatpush1.bf16.msra.mxu0 0
      %628 = vmatprep.subr.bf16.mxu0 0
      %629 = vmatpush1.bf16.msra.mxu0 0
      %630 = vmatprep.subr.bf16.mxu0 0
      %631 = vmatpush1.bf16.msra.mxu0 0
      %632 = vmatprep.subr.bf16.mxu0 0
      %633 = vmatpush1.bf16.msra.mxu0 0
      %634 = vmatprep.subr.bf16.mxu0 0
      %635 = vmatpush1.bf16.msra.mxu0 0
      %636 = vmatprep.subr.bf16.mxu0 0
      %637 = vmatpush1.bf16.msra.mxu0 0
      %638 = vmatprep.subr.bf16.mxu0 0
      %639 = vmatpush1.bf16.msra.mxu0 0
      %640 = vmatprep.subr.bf16.mxu0 0
      %641 = vmatpush1.bf16.msra.mxu0 0
      %642 = vmatprep.subr.bf16.mxu0 0
      %643 = vmatpush1.bf16.msra.mxu0 0
      %644 = vmatprep.subr.bf16.mxu0 0
      %645 = vmatpush1.bf16.msra.mxu0 0
      %646 = vmatprep.subr.bf16.mxu0 0
      %647 = vmatpush1.bf16.msra.mxu0 0
      %648 = vmatprep.mubr.bf16.mxu0 0
      %649 = vmatmul.mubr.bf16.gmra.mrb[0].mxu0 %v608
      %v650 = vpop.f32.mrb[0].mxu0
      %v651 = vadd.f32 0.0, %v650
      %v652 = vpop.f32.mrb[0].mxu0
      %v653 = vadd.f32 0.0, %v652
      %v654 = vpop.f32.mrb[0].mxu0
      %v655 = vpop.f32.mrb[0].mxu0
      %656 = vdwg.mxu0
      %v657 = vadd.f32 %v569, %v651
      %v658 = vadd.f32 %v570, %v653
      %v659 = vld [vmem:[#allocation2] sm:$0x3f]
      %s660 = scalar_lea.vmem %s1, 8
      %v661 = vld [vmem:[%s660] sm:$0x3]
      %v663 = vcombine.high %v659, %v659
      %v665 = vunpack.c.l.s4 1983009808
      %v666 = vunpack.c.0.s8 %v665
      %v667 = vlaneseq
      %v668 = vshrl.u32 %v667, 7
      %v669 = vsub.s32 %v666, %v668
      %v670 = vrot.slane %v659, %v669
      %v672 = vunpack.c.l.s4 1983009808
      %v673 = vunpack.c.0.s8 %v672
      %v674 = vlaneseq
      %v675 = vshrl.u32 %v674, 7
      %v676 = vsub.s32 %v673, %v675
      %v677 = vrot.slane %v663, %v676
      %v678 = vcombine.high %v670, %v670
      %679 = vrot.lane.b32.xlu0 %v670, 111
      %v680 = vpop.permute.xlu0 %679
      %681 = vrot.lane.b32.xlu0 %v678, 111
      %v682 = vpop.permute.xlu0 %681
      %683 = vrot.lane.b32.xlu0 %v677, 111
      %v684 = vpop.permute.xlu0 %683
      %vm685 = vcmask 908288
      %v686 = vsel %vm685, %v680, %v682
      %v687 = vsel %vm685, %v682, %v684
      %v689 = vsel %vm323, %v661, 0
      %v692 = vsel %vm327, %v686, 0
      %v695 = vsel %vm327, %v687, 0
      %697 = vmatprep.subr.bf16.mxu0 %v695
      %698 = vmatpush1.bf16.msra.mxu0 %v692
      %699 = vmatprep.subr.bf16.mxu0 0
      %700 = vmatpush1.bf16.msra.mxu0 0
      %701 = vmatprep.subr.bf16.mxu0 0
      %702 = vmatpush1.bf16.msra.mxu0 0
      %703 = vmatprep.subr.bf16.mxu0 0
      %704 = vmatpush1.bf16.msra.mxu0 0
      %705 = vmatprep.subr.bf16.mxu0 0
      %706 = vmatpush1.bf16.msra.mxu0 0
      %707 = vmatprep.subr.bf16.mxu0 0
      %708 = vmatpush1.bf16.msra.mxu0 0
      %709 = vmatprep.subr.bf16.mxu0 0
      %710 = vmatpush1.bf16.msra.mxu0 0
      %711 = vmatprep.subr.bf16.mxu0 0
      %712 = vmatpush1.bf16.msra.mxu0 0
      %713 = vmatprep.subr.bf16.mxu0 0
      %714 = vmatpush1.bf16.msra.mxu0 0
      %715 = vmatprep.subr.bf16.mxu0 0
      %716 = vmatpush1.bf16.msra.mxu0 0
      %717 = vmatprep.subr.bf16.mxu0 0
      %718 = vmatpush1.bf16.msra.mxu0 0
      %719 = vmatprep.subr.bf16.mxu0 0
      %720 = vmatpush1.bf16.msra.mxu0 0
      %721 = vmatprep.subr.bf16.mxu0 0
      %722 = vmatpush1.bf16.msra.mxu0 0
      %723 = vmatprep.subr.bf16.mxu0 0
      %724 = vmatpush1.bf16.msra.mxu0 0
      %725 = vmatprep.subr.bf16.mxu0 0
      %726 = vmatpush1.bf16.msra.mxu0 0
      %727 = vmatprep.subr.bf16.mxu0 0
      %728 = vmatpush1.bf16.msra.mxu0 0
      %729 = vmatprep.mubr.bf16.mxu0 0
      %730 = vmatmul.mubr.bf16.gmra.mrb[0].mxu0 %v689
      %v731 = vpop.f32.mrb[0].mxu0
      %v732 = vadd.f32 0.0, %v731
      %v733 = vpop.f32.mrb[0].mxu0
      %v734 = vadd.f32 0.0, %v733
      %v735 = vpop.f32.mrb[0].mxu0
      %v736 = vpop.f32.mrb[0].mxu0
      %737 = vdwg.mxu0
      %v738 = vadd.f32 %v657, %v732
      %v739 = vadd.f32 %v658, %v734
      %v740 = vld [vmem:[#allocation2] sm:$0x3f]
      %741 = vrot.lane.b32.xlu0 %v483, 18
      %v742 = vpop.permute.xlu0 %741
      %v743 = vrot.slane %v742, 6
      %vm744 = vcmask 146432
      %v745 = vsel %vm744, %v743, %v742
      %v747 = vmul.bf16 %v740, %v745
      %s748 = scalar_lea.vmem %s1, 10
      %v749 = vld [vmem:[%s748] sm:$0x3]
      %v751 = vcombine.high %v747, %v747
      %v753 = vunpack.c.l.s4 1983009808
      %v754 = vunpack.c.0.s8 %v753
      %v755 = vlaneseq
      %v756 = vshrl.u32 %v755, 7
      %v757 = vsub.s32 %v754, %v756
      %v758 = vrot.slane %v747, %v757
      %v760 = vunpack.c.l.s4 1983009808
      %v761 = vunpack.c.0.s8 %v760
      %v762 = vlaneseq
      %v763 = vshrl.u32 %v762, 7
      %v764 = vsub.s32 %v761, %v763
      %v765 = vrot.slane %v751, %v764
      %v766 = vcombine.high %v758, %v758
      %767 = vrot.lane.b32.xlu0 %v758, 110
      %v768 = vpop.permute.xlu0 %767
      %769 = vrot.lane.b32.xlu0 %v766, 110
      %v770 = vpop.permute.xlu0 %769
      %771 = vrot.lane.b32.xlu0 %v765, 110
      %v772 = vpop.permute.xlu0 %771
      %vm773 = vcmask 900096
      %v774 = vsel %vm773, %v768, %v770
      %v775 = vsel %vm773, %v770, %v772
      %v777 = vsel %vm323, %v749, 0
      %v780 = vsel %vm327, %v774, 0
      %v783 = vsel %vm327, %v775, 0
      %785 = vmatprep.subr.bf16.mxu0 %v783
      %786 = vmatpush1.bf16.msra.mxu0 %v780
      %787 = vmatprep.subr.bf16.mxu0 0
      %788 = vmatpush1.bf16.msra.mxu0 0
      %789 = vmatprep.subr.bf16.mxu0 0
      %790 = vmatpush1.bf16.msra.mxu0 0
      %791 = vmatprep.subr.bf16.mxu0 0
      %792 = vmatpush1.bf16.msra.mxu0 0
      %793 = vmatprep.subr.bf16.mxu0 0
      %794 = vmatpush1.bf16.msra.mxu0 0
      %795 = vmatprep.subr.bf16.mxu0 0
      %796 = vmatpush1.bf16.msra.mxu0 0
      %797 = vmatprep.subr.bf16.mxu0 0
      %798 = vmatpush1.bf16.msra.mxu0 0
      %799 = vmatprep.subr.bf16.mxu0 0
      %800 = vmatpush1.bf16.msra.mxu0 0
      %801 = vmatprep.subr.bf16.mxu0 0
      %802 = vmatpush1.bf16.msra.mxu0 0
      %803 = vmatprep.subr.bf16.mxu0 0
      %804 = vmatpush1.bf16.msra.mxu0 0
      %805 = vmatprep.subr.bf16.mxu0 0
      %806 = vmatpush1.bf16.msra.mxu0 0
      %807 = vmatprep.subr.bf16.mxu0 0
      %808 = vmatpush1.bf16.msra.mxu0 0
      %809 = vmatprep.subr.bf16.mxu0 0
      %810 = vmatpush1.bf16.msra.mxu0 0
      %811 = vmatprep.subr.bf16.mxu0 0
      %812 = vmatpush1.bf16.msra.mxu0 0
      %813 = vmatprep.subr.bf16.mxu0 0
      %814 = vmatpush1.bf16.msra.mxu0 0
      %815 = vmatprep.subr.bf16.mxu0 0
      %816 = vmatpush1.bf16.msra.mxu0 0
      %817 = vmatprep.mubr.bf16.mxu0 0
      %818 = vmatmul.mubr.bf16.gmra.mrb[0].mxu0 %v777
      %v819 = vpop.f32.mrb[0].mxu0
      %v820 = vadd.f32 0.0, %v819
      %v821 = vpop.f32.mrb[0].mxu0
      %v822 = vadd.f32 0.0, %v821
      %v823 = vpop.f32.mrb[0].mxu0
      %v824 = vpop.f32.mrb[0].mxu0
      %825 = vdwg.mxu0
      %v826 = vadd.f32 %v738, %v820
      %v827 = vadd.f32 %v739, %v822
      %v828 = vld [vmem:[#allocation2] sm:$0x3f]
      %829 = vrot.lane.b32.xlu0 %v290, 32
      %v830 = vpop.permute.xlu0 %829
      %v831 = vrot.slane %v830, 6
      %vm832 = vcmask 261120
      %v833 = vsel %vm832, %v831, %v830
      %v835 = vmul.bf16 %v828, %v833
      %s836 = scalar_lea.vmem %s1, 12
      %v837 = vld [vmem:[%s836] sm:$0x3]
      %v839 = vcombine.high %v835, %v835
      %v841 = vunpack.c.l.s4 1983009808
      %v842 = vunpack.c.0.s8 %v841
      %v843 = vlaneseq
      %v844 = vshrl.u32 %v843, 7
      %v845 = vsub.s32 %v842, %v844
      %v846 = vrot.slane %v835, %v845
      %v848 = vunpack.c.l.s4 1983009808
      %v849 = vunpack.c.0.s8 %v848
      %v850 = vlaneseq
      %v851 = vshrl.u32 %v850, 7
      %v852 = vsub.s32 %v849, %v851
      %v853 = vrot.slane %v839, %v852
      %v854 = vcombine.high %v846, %v846
      %855 = vrot.lane.b32.xlu0 %v846, 96
      %v856 = vpop.permute.xlu0 %855
      %857 = vrot.lane.b32.xlu0 %v854, 96
      %v858 = vpop.permute.xlu0 %857
      %859 = vrot.lane.b32.xlu0 %v853, 96
      %v860 = vpop.permute.xlu0 %859
      %vm861 = vcmask 785408
      %v862 = vsel %vm861, %v856, %v858
      %v863 = vsel %vm861, %v858, %v860
      %v865 = vsel %vm323, %v837, 0
      %v868 = vsel %vm327, %v862, 0
      %v871 = vsel %vm327, %v863, 0
      %873 = vmatprep.subr.bf16.mxu0 %v871
      %874 = vmatpush1.bf16.msra.mxu0 %v868
      %875 = vmatprep.subr.bf16.mxu0 0
      %876 = vmatpush1.bf16.msra.mxu0 0
      %877 = vmatprep.subr.bf16.mxu0 0
      %878 = vmatpush1.bf16.msra.mxu0 0
      %879 = vmatprep.subr.bf16.mxu0 0
      %880 = vmatpush1.bf16.msra.mxu0 0
      %881 = vmatprep.subr.bf16.mxu0 0
      %882 = vmatpush1.bf16.msra.mxu0 0
      %883 = vmatprep.subr.bf16.mxu0 0
      %884 = vmatpush1.bf16.msra.mxu0 0
      %885 = vmatprep.subr.bf16.mxu0 0
      %886 = vmatpush1.bf16.msra.mxu0 0
      %887 = vmatprep.subr.bf16.mxu0 0
      %888 = vmatpush1.bf16.msra.mxu0 0
      %889 = vmatprep.subr.bf16.mxu0 0
      %890 = vmatpush1.bf16.msra.mxu0 0
      %891 = vmatprep.subr.bf16.mxu0 0
      %892 = vmatpush1.bf16.msra.mxu0 0
      %893 = vmatprep.subr.bf16.mxu0 0
      %894 = vmatpush1.bf16.msra.mxu0 0
      %895 = vmatprep.subr.bf16.mxu0 0
      %896 = vmatpush1.bf16.msra.mxu0 0
      %897 = vmatprep.subr.bf16.mxu0 0
      %898 = vmatpush1.bf16.msra.mxu0 0
      %899 = vmatprep.subr.bf16.mxu0 0
      %900 = vmatpush1.bf16.msra.mxu0 0
      %901 = vmatprep.subr.bf16.mxu0 0
      %902 = vmatpush1.bf16.msra.mxu0 0
      %903 = vmatprep.subr.bf16.mxu0 0
      %904 = vmatpush1.bf16.msra.mxu0 0
      %905 = vmatprep.mubr.bf16.mxu0 0
      %906 = vmatmul.mubr.bf16.gmra.mrb[0].mxu0 %v865
      %v907 = vpop.f32.mrb[0].mxu0
      %v908 = vadd.f32 0.0, %v907
      %v909 = vpop.f32.mrb[0].mxu0
      %v910 = vadd.f32 0.0, %v909
      %v911 = vpop.f32.mrb[0].mxu0
      %v912 = vpop.f32.mrb[0].mxu0
      %913 = vdwg.mxu0
      %v914 = vadd.f32 %v826, %v908
      %v915 = vadd.f32 %v827, %v910
      %v916 = vld [vmem:[#allocation2] sm:$0x3f]
      %s917 = scalar_lea.vmem %s1, 14
      %v918 = vld [vmem:[%s917] sm:$0x3]
      %v920 = vcombine.high %v916, %v916
      %v922 = vunpack.c.l.s4 1983009808
      %v923 = vunpack.c.0.s8 %v922
      %v924 = vlaneseq
      %v925 = vshrl.u32 %v924, 7
      %v926 = vsub.s32 %v923, %v925
      %v927 = vrot.slane %v916, %v926
      %v929 = vunpack.c.l.s4 1983009808
      %v930 = vunpack.c.0.s8 %v929
      %v931 = vlaneseq
      %v932 = vshrl.u32 %v931, 7
      %v933 = vsub.s32 %v930, %v932
      %v934 = vrot.slane %v920, %v933
      %v935 = vcombine.high %v927, %v927
      %936 = vrot.lane.b32.xlu0 %v927, 95
      %v937 = vpop.permute.xlu0 %936
      %938 = vrot.lane.b32.xlu0 %v935, 95
      %v939 = vpop.permute.xlu0 %938
      %940 = vrot.lane.b32.xlu0 %v934, 95
      %v941 = vpop.permute.xlu0 %940
      %vm942 = vcmask 777216
      %v943 = vsel %vm942, %v937, %v939
      %v944 = vsel %vm942, %v939, %v941
      %v946 = vsel %vm323, %v918, 0
      %v949 = vsel %vm327, %v943, 0
      %v952 = vsel %vm327, %v944, 0
      %954 = vmatprep.subr.bf16.mxu0 %v952
      %955 = vmatpush1.bf16.msra.mxu0 %v949
      %956 = vmatprep.subr.bf16.mxu0 0
      %957 = vmatpush1.bf16.msra.mxu0 0
      %958 = vmatprep.subr.bf16.mxu0 0
      %959 = vmatpush1.bf16.msra.mxu0 0
      %960 = vmatprep.subr.bf16.mxu0 0
      %961 = vmatpush1.bf16.msra.mxu0 0
      %962 = vmatprep.subr.bf16.mxu0 0
      %963 = vmatpush1.bf16.msra.mxu0 0
      %964 = vmatprep.subr.bf16.mxu0 0
      %965 = vmatpush1.bf16.msra.mxu0 0
      %966 = vmatprep.subr.bf16.mxu0 0
      %967 = vmatpush1.bf16.msra.mxu0 0
      %968 = vmatprep.subr.bf16.mxu0 0
      %969 = vmatpush1.bf16.msra.mxu0 0
      %970 = vmatprep.subr.bf16.mxu0 0
      %971 = vmatpush1.bf16.msra.mxu0 0
      %972 = vmatprep.subr.bf16.mxu0 0
      %973 = vmatpush1.bf16.msra.mxu0 0
      %974 = vmatprep.subr.bf16.mxu0 0
      %975 = vmatpush1.bf16.msra.mxu0 0
      %976 = vmatprep.subr.bf16.mxu0 0
      %977 = vmatpush1.bf16.msra.mxu0 0
      %978 = vmatprep.subr.bf16.mxu0 0
      %979 = vmatpush1.bf16.msra.mxu0 0
      %980 = vmatprep.subr.bf16.mxu0 0
      %981 = vmatpush1.bf16.msra.mxu0 0
      %982 = vmatprep.subr.bf16.mxu0 0
      %983 = vmatpush1.bf16.msra.mxu0 0
      %984 = vmatprep.subr.bf16.mxu0 0
      %985 = vmatpush1.bf16.msra.mxu0 0
      %986 = vmatprep.mubr.bf16.mxu0 0
      %987 = vmatmul.mubr.bf16.gmra.mrb[0].mxu0 %v946
      %v988 = vpop.f32.mrb[0].mxu0
      %v989 = vadd.f32 0.0, %v988
      %v990 = vpop.f32.mrb[0].mxu0
      %v991 = vadd.f32 0.0, %v990
      %v992 = vpop.f32.mrb[0].mxu0
      %v993 = vpop.f32.mrb[0].mxu0
      %994 = vdwg.mxu0
      %v995 = vadd.f32 %v914, %v989
      %v996 = vadd.f32 %v915, %v991
      %v997 = vld [vmem:[#allocation2] sm:$0x3f]
      %998 = vrot.lane.b32.xlu0 %v483, 34
      %v999 = vpop.permute.xlu0 %998
      %v1000 = vrot.slane %v999, 6
      %vm1001 = vcmask 277504
      %v1002 = vsel %vm1001, %v1000, %v999
      %v1004 = vmul.bf16 %v997, %v1002
      %s1005 = scalar_lea.vmem %s1, 16
      %v1006 = vld [vmem:[%s1005] sm:$0x3]
      %v1008 = vcombine.high %v1004, %v1004
      %v1010 = vunpack.c.l.s4 1983009808
      %v1011 = vunpack.c.0.s8 %v1010
      %v1012 = vlaneseq
      %v1013 = vshrl.u32 %v1012, 7
      %v1014 = vsub.s32 %v1011, %v1013
      %v1015 = vrot.slane %v1004, %v1014
      %v1017 = vunpack.c.l.s4 1983009808
      %v1018 = vunpack.c.0.s8 %v1017
      %v1019 = vlaneseq
      %v1020 = vshrl.u32 %v1019, 7
      %v1021 = vsub.s32 %v1018, %v1020
      %v1022 = vrot.slane %v1008, %v1021
      %v1023 = vcombine.high %v1015, %v1015
      %1024 = vrot.lane.b32.xlu0 %v1015, 94
      %v1025 = vpop.permute.xlu0 %1024
      %1026 = vrot.lane.b32.xlu0 %v1023, 94
      %v1027 = vpop.permute.xlu0 %1026
      %1028 = vrot.lane.b32.xlu0 %v1022, 94
      %v1029 = vpop.permute.xlu0 %1028
      %vm1030 = vcmask 769024
      %v1031 = vsel %vm1030, %v1025, %v1027
      %v1032 = vsel %vm1030, %v1027, %v1029
      %v1034 = vsel %vm323, %v1006, 0
      %v1037 = vsel %vm327, %v1031, 0
      %v1040 = vsel %vm327, %v1032, 0
      %1042 = vmatprep.subr.bf16.mxu0 %v1040
      %1043 = vmatpush1.bf16.msra.mxu0 %v1037
      %1044 = vmatprep.subr.bf16.mxu0 0
      %1045 = vmatpush1.bf16.msra.mxu0 0
      %1046 = vmatprep.subr.bf16.mxu0 0
      %1047 = vmatpush1.bf16.msra.mxu0 0
      %1048 = vmatprep.subr.bf16.mxu0 0
      %1049 = vmatpush1.bf16.msra.mxu0 0
      %1050 = vmatprep.subr.bf16.mxu0 0
      %1051 = vmatpush1.bf16.msra.mxu0 0
      %1052 = vmatprep.subr.bf16.mxu0 0
      %1053 = vmatpush1.bf16.msra.mxu0 0
      %1054 = vmatprep.subr.bf16.mxu0 0
      %1055 = vmatpush1.bf16.msra.mxu0 0
      %1056 = vmatprep.subr.bf16.mxu0 0
      %1057 = vmatpush1.bf16.msra.mxu0 0
      %1058 = vmatprep.subr.bf16.mxu0 0
      %1059 = vmatpush1.bf16.msra.mxu0 0
      %1060 = vmatprep.subr.bf16.mxu0 0
      %1061 = vmatpush1.bf16.msra.mxu0 0
      %1062 = vmatprep.subr.bf16.mxu0 0
      %1063 = vmatpush1.bf16.msra.mxu0 0
      %1064 = vmatprep.subr.bf16.mxu0 0
      %1065 = vmatpush1.bf16.msra.mxu0 0
      %1066 = vmatprep.subr.bf16.mxu0 0
      %1067 = vmatpush1.bf16.msra.mxu0 0
      %1068 = vmatprep.subr.bf16.mxu0 0
      %1069 = vmatpush1.bf16.msra.mxu0 0
      %1070 = vmatprep.subr.bf16.mxu0 0
      %1071 = vmatpush1.bf16.msra.mxu0 0
      %1072 = vmatprep.subr.bf16.mxu0 0
      %1073 = vmatpush1.bf16.msra.mxu0 0
      %1074 = vmatprep.mubr.bf16.mxu0 0
      %1075 = vmatmul.mubr.bf16.gmra.mrb[0].mxu0 %v1034
      %v1076 = vpop.f32.mrb[0].mxu0
      %v1077 = vadd.f32 0.0, %v1076
      %v1078 = vpop.f32.mrb[0].mxu0
      %v1079 = vadd.f32 0.0, %v1078
      %v1080 = vpop.f32.mrb[0].mxu0
      %v1081 = vpop.f32.mrb[0].mxu0
      %1082 = vdwg.mxu0
      %v1083 = vadd.f32 %v995, %v1077
      %v1084 = vadd.f32 %v996, %v1079
      %v1085 = vpack.c.bf16 %v1083, %v1083
      %v1086 = vpack.c.bf16 %v1084, %v1084
      %v1089 = vcombine.low %v1085, %v1086
      %v1091 = vunpack.c.l.s4 1983009808
      %v1092 = vunpack.c.0.s8 %v1091
      %v1093 = vlaneseq
      %v1094 = vshrl.u32 %v1093, 7
      %v1095 = vsub.s32 %v1092, %v1094
      %v1096 = vrot.slane %v1089, %v1095
      %1098 = vst [vmem:[%s204] sm:$0xf] %v1096
      %vm1099 = vcmask 1043456
      %v1100 = vsel %vm1099, %v1083, 0.0
      %v1101 = vsel %vm1099, %v1084, 0.0
      %v1102 = vadd.f32 %v1100, %v1101
      %1103 = vadd.xlane.f32.xlu0 %v1102
      %v1104 = vpop.xlane.xlu0 %1103
      %v1105 = vmul.f32 %v1104, 0.00390625
      %v1106 = vsub.f32 %v1083, %v1105
      %v1107 = vsub.f32 %v1084, %v1105
      %vm1108 = vcmask 3072
      %1109 = vst.msk [vmem:[%s208] sm:$0xf] %vm1108, %v1104
      %v1110 = vmul.f32 %v1106, %v1106
      %v1111 = vmul.f32 %v1107, %v1107
      %v1112 = vsel %vm1099, %v1110, 0.0
      %v1113 = vsel %vm1099, %v1111, 0.0
      %v1114 = vadd.f32 %v1112, %v1113
      %1115 = vadd.xlane.f32.xlu0 %v1114
      %v1116 = vpop.xlane.xlu0 %1115
      %vm1117 = vcmask 11272
      %1118 = vst.msk [vmem:[%s208] sm:$0xf] %vm1117, %v1116
      %p1119 = scmp.lt.s32.totalorder %s16, 1
      %s1120 = scalar_select %p1119, %s16, 1
      %s1121 = smul.addr %s1120, 2
      %s1122 = smul.addr %s1121, 2
      %s1123 = scalar_lea.vmem %s3, %s1122
      %p1124 = scmp.lt.s32.totalorder %s16, 1
      %s1125 = scalar_select %p1124, %s16, 1
      %s1126 = smul.addr %s1125, 4
      %s1127 = scalar_lea.vmem %s4, %s1126
      // Predicated region
      $region33: #{resnet_forward.4} parent=31 // pred_check
        %p1128 = pneg %p102
      $region34: #{resnet_forward.4} parent=31 // pred_check_branch
        %1130 = sbr.rel (%p1128) target = $region36
      $region35: #{resnet_forward.4} parent=31 // pred_region
        _
      $region36: #{resnet_forward.4} parent=31 // pred_fallthru
        _
      // Predicated region
      $region37: #{resnet_forward.4} parent=31 // pred_check
        %p1131 = pneg %p128
      $region38: #{resnet_forward.4} parent=31 // pred_check_branch
        %1133 = sbr.rel (%p1131) target = $region40
      $region39: #{resnet_forward.4} parent=31 // pred_region
        _
      $region40: #{resnet_forward.4} parent=31 // pred_fallthru
        _
    $region32: #{resnet_forward.4} parent=5 // pred_fallthru
      _
    %p1134 = scmp.le.s32.totalorder 2, %s11
    // Predicated region
    $region41: #{resnet_forward.4} parent=5 // pred_check
      %p1135 = pneg %p1134
    $region42: #{resnet_forward.4} parent=5 // pred_check_branch
      %1137 = sbr.rel (%p1135) target = $region44
    $region43: #{resnet_forward.4} parent=5 // pred_region
      %s1138 = ssub.s32 %s11, 2
      // Predicated region
      $region45: #{resnet_forward.4} parent=43 // pred_check
        %p1139 = pneg %p108
      $region46: #{resnet_forward.4} parent=43 // pred_check_branch
        %1141 = sbr.rel (%p1139) target = $region48
      $region47: #{resnet_forward.4} parent=43 // pred_region
        %p1142 = scmp.lt.s32.totalorder %s17, 1
        %s1143 = scalar_select %p1142, %s17, 1
        %s1144 = smul.addr %s1143, 2
        %s1145 = smul.addr %s1144, 2
        %s1146 = scalar_lea.vmem %s3, %s1145
      $region48: #{resnet_forward.4} parent=43 // pred_fallthru
        _
      // Predicated region
      $region49: #{resnet_forward.4} parent=43 // pred_check
        %p1147 = pneg %p134
      $region50: #{resnet_forward.4} parent=43 // pred_check_branch
        %1149 = sbr.rel (%p1147) target = $region52
      $region51: #{resnet_forward.4} parent=43 // pred_region
        %p1150 = scmp.lt.s32.totalorder %s17, 1
        %s1151 = scalar_select %p1150, %s17, 1
        %s1152 = smul.addr %s1151, 4
        %s1153 = scalar_lea.vmem %s4, %s1152
      $region52: #{resnet_forward.4} parent=43 // pred_fallthru
        _
    $region44: #{resnet_forward.4} parent=5 // pred_fallthru
      _
  $region6: #{resnet_forward.4} parent=0 // loop_footer
    %s15 = sadd.s32 1, %s11
  $region7: #{resnet_forward.4} parent=0 // loop_footer_branch
    %10 = sbr.rel target = $region3
  $region8: #{resnet_forward.4} parent=0 // loop_exit
    _

</llo_original>
